<compile_context>
chip_gen: v6e
topology: v6e:2x2x1
jax: 0.10.0
libtpu: 0.0.40
codegen_flags: <defaults>
</compile_context>

<pallas_src>
import functools

import jax
import jax.numpy as jnp
from jax.experimental import pallas as pl
from jax.experimental.pallas import tpu as pltpu


def _llama_mlp_kernel(x_ref, wg_ref, wu_ref, wd_ref, o_ref, acc_ref, *, n_i):
    j = pl.program_id(1)

    x = x_ref[...]                                             # [tm, H] (bf16/f32)

    # Gate / up projections on the MXU, f32 accumulation.
    gate = jnp.dot(x, wg_ref[...], preferred_element_type=jnp.float32)   # [tm, ti]
    up = jnp.dot(x, wu_ref[...], preferred_element_type=jnp.float32)     # [tm, ti]

    # SiluAndMul in f32 (sigmoid goes to the EUP), then back to the MXU dtype.
    h = (gate * jax.nn.sigmoid(gate) * up).astype(wd_ref.dtype)          # [tm, ti]

    # Partial down projection for this I-tile.
    p = jnp.dot(h, wd_ref[...], preferred_element_type=jnp.float32)      # [tm, H]

    if n_i == 1:
        # Single reduction step (decode-style): no accumulator traffic at all.
        o_ref[...] = p.astype(o_ref.dtype)
    else:
        @pl.when(j == 0)
        def _():
            acc_ref[...] = p                                   # init = first partial

        @pl.when(jnp.logical_and(j > 0, j < n_i - 1))
        def _():
            acc_ref[...] += p

        @pl.when(j == n_i - 1)
        def _():
            # Fuse last accumulate with the output cast (saves one f32 RMW).
            o_ref[...] = (acc_ref[...] + p).astype(o_ref.dtype)


def prepare_llama_mlp_weights(w_gate_up, w_down, *, dtype=jnp.bfloat16):
    """One-time weight re-layout. Call at weight-load time, NOT per forward.

    w_gate_up: [2*I, H]  (MergedColumnParallelLinear weight, rows = [gate; up])
    w_down:    [H, I]    (RowParallelLinear weight)
    returns (w_gate_t [H, I], w_up_t [H, I], w_down_t [I, H]) in `dtype`.
    """
    two_i, H = w_gate_up.shape
    I = two_i // 2
    assert w_down.shape == (H, I)
    w_gate_t = jnp.asarray(w_gate_up[:I].T, dtype=dtype)       # [H, I]
    w_up_t = jnp.asarray(w_gate_up[I:].T, dtype=dtype)         # [H, I]
    w_down_t = jnp.asarray(w_down.T, dtype=dtype)              # [I, H]
    return w_gate_t, w_up_t, w_down_t


def _default_vmem_limit(tm, ti, H, x_dtype, w_dtype, out_dtype):
    it_x = jnp.dtype(x_dtype).itemsize
    it_w = jnp.dtype(w_dtype).itemsize
    it_o = jnp.dtype(out_dtype).itemsize
    # Double-buffered pipelined tiles + resident f32 accumulator + headroom.
    pipelined = 2 * (tm * H * it_x + 2 * (H * ti) * it_w + ti * H * it_w
                     + tm * H * it_o)
    acc = tm * H * 4
    need = pipelined + acc + (16 << 20)
    return int(min(128 << 20, max(32 << 20, need)))


def llama_mlp(x, w_gate_t, w_up_t, w_down_t, *, tm=None, ti=None,
              vmem_limit_bytes=None):
    """SwiGLU MLP forward with pre-laid-out weights (see prepare_llama_mlp_weights).

    x:         [T, H]
    w_gate_t:  [H, I]
    w_up_t:    [H, I]
    w_down_t:  [I, H]
    returns    [T, H] in x.dtype
    """
    T, H = x.shape
    H2, I = w_gate_t.shape
    assert H2 == H and w_up_t.shape == (H, I) and w_down_t.shape == (I, H)
    assert w_gate_t.dtype == w_up_t.dtype == w_down_t.dtype
    w_dtype = w_gate_t.dtype

    # Tile defaults: big token tiles for prefill (weight re-streaming amortizes
    # over tm rows), clamped to T for decode; ti=512 where I allows.
    if tm is None:
        tm = T if T <= 256 else 256
    if ti is None:
        ti = min(I, 512)
    assert T % tm == 0, "token count must be a multiple of tm (pad upstream)"
    assert I % ti == 0, "intermediate size must be a multiple of ti"
    assert tm % 8 == 0 and ti % 128 == 0 and H % 128 == 0, \
        "tile shapes must respect the (8,128) TPU tiling constraint"
    n_i = I // ti

    out_dtype = x.dtype
    # MXU operands in the weight dtype (bf16 in production); f32 accumulation.
    x_mm = x if x.dtype == w_dtype else x.astype(w_dtype)

    if vmem_limit_bytes is None:
        vmem_limit_bytes = _default_vmem_limit(tm, ti, H, w_dtype, w_dtype,
                                               out_dtype)

    it_w = jnp.dtype(w_dtype).itemsize
    it_x = jnp.dtype(x_mm.dtype).itemsize
    it_o = jnp.dtype(out_dtype).itemsize
    cost = pl.CostEstimate(
        flops=6 * T * H * I,                       # gate + up + down matmuls
        transcendentals=T * I,                     # sigmoid
        bytes_accessed=(T * H * (it_x + it_o)      # x read + out write
                        + (T // tm) * 3 * I * H * it_w),  # weights re-streamed
    )

    kernel = functools.partial(_llama_mlp_kernel, n_i=n_i)
    return pl.pallas_call(
        kernel,
        out_shape=jax.ShapeDtypeStruct((T, H), out_dtype),
        grid_spec=pltpu.PrefetchScalarGridSpec(
            num_scalar_prefetch=0,
            grid=(T // tm, n_i),
            in_specs=[
                pl.BlockSpec((tm, H), lambda i, j: (i, 0)),    # x token tile
                pl.BlockSpec((H, ti), lambda i, j: (0, j)),    # gate-proj I-tile
                pl.BlockSpec((H, ti), lambda i, j: (0, j)),    # up-proj I-tile
                pl.BlockSpec((ti, H), lambda i, j: (j, 0)),    # down-proj I-tile
            ],
            out_specs=pl.BlockSpec((tm, H), lambda i, j: (i, 0)),
            scratch_shapes=[pltpu.VMEM((tm, H), jnp.float32)],  # f32 accumulator
        ),
        compiler_params=pltpu.CompilerParams(
            dimension_semantics=("parallel", "arbitrary"),
            vmem_limit_bytes=vmem_limit_bytes,
        ),
        cost_estimate=cost,
    )(x_mm, w_gate_t, w_up_t, w_down_t)


def llama_mlp_ref(x, w_gate_up, w_down):
    I = w_gate_up.shape[0] // 2
    xf = x.astype(jnp.float32)
    gu = xf @ w_gate_up.astype(jnp.float32).T
    gate, up = gu[:, :I], gu[:, I:]
    h = gate * jax.nn.sigmoid(gate) * up
    return h @ w_down.astype(jnp.float32).T


if __name__ == "__main__":
    # Small-but-tileable shapes: 128 tokens, hidden=256, intermediate=512.
    T, H, I = 128, 256, 512

    key = jax.random.PRNGKey(0)
    kx, kgu, kd = jax.random.split(key, 3)
    x_f32 = jax.random.normal(kx, (T, H), dtype=jnp.float32)
    w_gate_up = jax.random.normal(kgu, (2 * I, H), dtype=jnp.float32) * 0.05
    w_down = jax.random.normal(kd, (H, I), dtype=jnp.float32) * 0.05

    ref = llama_mlp_ref(x_f32, w_gate_up, w_down)

    # One-time weight re-layout + cast to bf16 (production MXU path).
    wg_t, wu_t, wd_t = prepare_llama_mlp_weights(w_gate_up, w_down,
                                                 dtype=jnp.bfloat16)
    x_bf16 = x_f32.astype(jnp.bfloat16)

    # Multi-step reduction path (n_i = 2).
    out = llama_mlp(x_bf16, wg_t, wu_t, wd_t, tm=128, ti=256)
    out = jax.block_until_ready(out)
    assert out.shape == (T, H)
    assert jnp.allclose(out.astype(jnp.float32), ref, atol=5e-2, rtol=5e-2), \
        "mismatch vs reference (multi-step reduction)"

    # Single-step reduction path (n_i = 1, decode-style).
    out1 = llama_mlp(x_bf16, wg_t, wu_t, wd_t, tm=128, ti=512)
    out1 = jax.block_until_ready(out1)
    assert jnp.allclose(out1.astype(jnp.float32), ref, atol=5e-2, rtol=5e-2), \
        "mismatch vs reference (single-step reduction)"

    # TODO(synk): tensor-parallel all-reduce of the RowParallelLinear output is
    # a cross-device collective and is left to the caller (single-device here).
    print("KERNEL_OK")
</pallas_src>

<mosaic_0001>
module attributes {stable_mosaic.version = 11 : i64} {
  func.func @_llama_mlp_kernel(%arg0: i32, %arg1: i32, %arg2: memref<128x256xbf16, #tpu.memory_space<vmem>>, %arg3: memref<256x256xbf16, #tpu.memory_space<vmem>>, %arg4: memref<256x256xbf16, #tpu.memory_space<vmem>>, %arg5: memref<256x256xbf16, #tpu.memory_space<vmem>>, %arg6: memref<128x256xbf16, #tpu.memory_space<vmem>>, %arg7: memref<128x256xf32, #tpu.memory_space<vmem>>) attributes {dimension_semantics = [#tpu.dimension_semantics<parallel>, #tpu.dimension_semantics<arbitrary>], iteration_bounds = array<i64: 1, 2>, scalar_prefetch = 0 : i64, scratch_operands = 1 : i64, tpu.core_type = #tpu.core_type<tc>, window_params = [{transform_indices = @transform_0, window_bounds = array<i64: 128, 256>}, {transform_indices = @transform_1, window_bounds = array<i64: 256, 256>}, {transform_indices = @transform_2, window_bounds = array<i64: 256, 256>}, {transform_indices = @transform_3, window_bounds = array<i64: 256, 256>}, {transform_indices = @transform_4, window_bounds = array<i64: 128, 256>}]} {
    %c0 = arith.constant 0 : index
    %c0_0 = arith.constant 0 : index
    %0 = vector.load %arg2[%c0, %c0_0] : memref<128x256xbf16, #tpu.memory_space<vmem>>, vector<128x256xbf16>
    %c0_1 = arith.constant 0 : index
    %c0_2 = arith.constant 0 : index
    %1 = vector.load %arg3[%c0_1, %c0_2] : memref<256x256xbf16, #tpu.memory_space<vmem>>, vector<256x256xbf16>
    %cst = arith.constant dense<0.000000e+00> : vector<128x256xf32>
    %2 = tpu.matmul %0, %1, %cst {dimension_numbers = #tpu.dot_dimension_numbers<[1], [0], [0], [1], [0, 0, 1, 1], [], []>} : vector<128x256xbf16>, vector<256x256xbf16>, vector<128x256xf32> -> vector<128x256xf32>
    %c0_3 = arith.constant 0 : index
    %c0_4 = arith.constant 0 : index
    %3 = vector.load %arg4[%c0_3, %c0_4] : memref<256x256xbf16, #tpu.memory_space<vmem>>, vector<256x256xbf16>
    %cst_5 = arith.constant dense<0.000000e+00> : vector<128x256xf32>
    %4 = tpu.matmul %0, %3, %cst_5 {dimension_numbers = #tpu.dot_dimension_numbers<[1], [0], [0], [1], [0, 0, 1, 1], [], []>} : vector<128x256xbf16>, vector<256x256xbf16>, vector<128x256xf32> -> vector<128x256xf32>
    %5 = arith.negf %2 : vector<128x256xf32>
    %6 = math.exp %5 : vector<128x256xf32>
    %cst_6 = arith.constant 1.000000e+00 : f32
    %7 = vector.broadcast %cst_6 : f32 to vector<128x256xf32>
    %8 = arith.addf %7, %6 : vector<128x256xf32>
    %9 = arith.divf %7, %8 : vector<128x256xf32>
    %10 = arith.mulf %2, %9 : vector<128x256xf32>
    %11 = arith.mulf %10, %4 : vector<128x256xf32>
    %12 = arith.truncf %11 : vector<128x256xf32> to vector<128x256xbf16>
    %c0_7 = arith.constant 0 : index
    %c0_8 = arith.constant 0 : index
    %13 = vector.load %arg5[%c0_7, %c0_8] : memref<256x256xbf16, #tpu.memory_space<vmem>>, vector<256x256xbf16>
    %cst_9 = arith.constant dense<0.000000e+00> : vector<128x256xf32>
    %14 = tpu.matmul %12, %13, %cst_9 {dimension_numbers = #tpu.dot_dimension_numbers<[1], [0], [0], [1], [0, 0, 1, 1], [], []>} : vector<128x256xbf16>, vector<256x256xbf16>, vector<128x256xf32> -> vector<128x256xf32>
    %c0_i32 = arith.constant 0 : i32
    %15 = arith.cmpi eq, %arg1, %c0_i32 : i32
    %16 = arith.extui %15 : i1 to i32
    %c0_i32_10 = arith.constant 0 : i32
    %17 = arith.cmpi ne, %16, %c0_i32_10 : i32
    scf.if %17 {
      %c0_15 = arith.constant 0 : index
      %c0_16 = arith.constant 0 : index
      %26 = vector.load %arg7[%c0_15, %c0_16] : memref<128x256xf32, #tpu.memory_space<vmem>>, vector<128x256xf32>
      tpu.vector_store %arg7[%c0_15, %c0_16], %14 {strides = array<i32>} : memref<128x256xf32, #tpu.memory_space<vmem>>, vector<128x256xf32>,
    } else {
    }
    %c0_i32_11 = arith.constant 0 : i32
    %18 = arith.cmpi sgt, %arg1, %c0_i32_11 : i32
    %c1_i32 = arith.constant 1 : i32
    %19 = arith.cmpi slt, %arg1, %c1_i32 : i32
    %20 = arith.andi %18, %19 : i1
    %21 = arith.extui %20 : i1 to i32
    %c0_i32_12 = arith.constant 0 : i32
    %22 = arith.cmpi ne, %21, %c0_i32_12 : i32
    scf.if %22 {
      %c0_15 = arith.constant 0 : index
      %c0_16 = arith.constant 0 : index
      %26 = vector.load %arg7[%c0_15, %c0_16] : memref<128x256xf32, #tpu.memory_space<vmem>>, vector<128x256xf32>
      %27 = arith.addf %26, %14 : vector<128x256xf32>
      %c0_17 = arith.constant 0 : index
      %c0_18 = arith.constant 0 : index
      %28 = vector.load %arg7[%c0_17, %c0_18] : memref<128x256xf32, #tpu.memory_space<vmem>>, vector<128x256xf32>
      tpu.vector_store %arg7[%c0_17, %c0_18], %27 {strides = array<i32>} : memref<128x256xf32, #tpu.memory_space<vmem>>, vector<128x256xf32>,
    } else {
    }
    %c1_i32_13 = arith.constant 1 : i32
    %23 = arith.cmpi eq, %arg1, %c1_i32_13 : i32
    %24 = arith.extui %23 : i1 to i32
    %c0_i32_14 = arith.constant 0 : i32
    %25 = arith.cmpi ne, %24, %c0_i32_14 : i32
    scf.if %25 {
      %c0_15 = arith.constant 0 : index
      %c0_16 = arith.constant 0 : index
      %26 = vector.load %arg7[%c0_15, %c0_16] : memref<128x256xf32, #tpu.memory_space<vmem>>, vector<128x256xf32>
      %27 = arith.addf %26, %14 : vector<128x256xf32>
      %28 = arith.truncf %27 : vector<128x256xf32> to vector<128x256xbf16>
      %c0_17 = arith.constant 0 : index
      %c0_18 = arith.constant 0 : index
      %29 = vector.load %arg6[%c0_17, %c0_18] : memref<128x256xbf16, #tpu.memory_space<vmem>>, vector<128x256xbf16>
      tpu.vector_store %arg6[%c0_17, %c0_18], %28 {strides = array<i32>} : memref<128x256xbf16, #tpu.memory_space<vmem>>, vector<128x256xbf16>,
    } else {
    }
    return
  }
  func.func @transform_0(%arg0: i32, %arg1: i32) -> (i32, i32) {
    %c0_i32 = arith.constant 0 : i32
    %c0_i32_0 = arith.constant 0 : i32
    return %arg0, %c0_i32 : i32, i32
  }
  func.func @transform_1(%arg0: i32, %arg1: i32) -> (i32, i32) {
    %c0_i32 = arith.constant 0 : i32
    %c0_i32_0 = arith.constant 0 : i32
    return %c0_i32, %arg1 : i32, i32
  }
  func.func @transform_2(%arg0: i32, %arg1: i32) -> (i32, i32) {
    %c0_i32 = arith.constant 0 : i32
    %c0_i32_0 = arith.constant 0 : i32
    return %c0_i32, %arg1 : i32, i32
  }
  func.func @transform_3(%arg0: i32, %arg1: i32) -> (i32, i32) {
    %c0_i32 = arith.constant 0 : i32
    %c0_i32_0 = arith.constant 0 : i32
    return %arg1, %c0_i32 : i32, i32
  }
  func.func @transform_4(%arg0: i32, %arg1: i32) -> (i32, i32) {
    %c0_i32 = arith.constant 0 : i32
    %c0_i32_0 = arith.constant 0 : i32
    return %arg0, %c0_i32 : i32, i32
  }
}

</mosaic_0001>

<llo_original>
// kernel: tpu_custom_call.1
$region0: #{tpu_custom_call.1}
  #allocation0 [shape = 'u32[]', space=smem, size = 0x4, offset = 0x4, fixed_abs, tag = 'smem constant byte address 0x4 - core index']
  #allocation1 [shape = 'u32[144,128]{1,0:T(1,128)}', space=vmem, size = 0x12000, scoped, tag = 'internal scratch']
  #allocation2 [shape = 'f32[128,256]{1,0:T(8,128)}', space=vmem, size = 0x20000, scoped, tag = 'scratch operand']
  %s0 = inlined_call_operand.hbm [shape: bf16[128,256], index: 0, kind: input, shape index: {}]
  %s1 = inlined_call_operand.hbm [shape: bf16[256,512], index: 1, kind: input, shape index: {}]
  %s2 = inlined_call_operand.hbm [shape: bf16[256,512], index: 2, kind: input, shape index: {}]
  %s3 = inlined_call_operand.hbm [shape: bf16[512,256], index: 3, kind: input, shape index: {}]
  %s4 = inlined_call_operand.hbm [shape: bf16[128,256], index: 4, kind: output, shape index: {}]
  %s5 = sld [smem:[#allocation0]]
  $region77: #{tpu_custom_call.1} parent=0
    _
  %s7 = ssub.s32 1, %s5
  %s8 = scalar_select 0, %s7, %s5
  $region1: #{tpu_custom_call.1} parent=0
    #allocation3 [shape = 'u8[65536]{0}', space=vmem, size = 0x10000, scoped, tag = 'input window, operand 0, single buffered']
    #allocation4 [shape = 's32[2]{0}', space=sflag, size = 0x8, scoped, tag = 'scoped memory for tpu_custom_call.1']
    #allocation5 [shape = 's32[2]{0}', space=sflag, size = 0x8, scoped, tag = 'scoped memory for tpu_custom_call.1']
    #allocation6 [shape = 'u8[262144]{0}', space=vmem, size = 0x40000, scoped, tag = 'input window, operand 1']
    #allocation7 [shape = 's32[2]{0}', space=sflag, size = 0x8, scoped, tag = 'scoped memory for tpu_custom_call.1']
    #allocation8 [shape = 'u8[262144]{0}', space=vmem, size = 0x40000, scoped, tag = 'input window, operand 2']
    #allocation9 [shape = 'u8[262144]{0}', space=vmem, size = 0x40000, scoped, tag = 'input window, operand 3']
    #allocation10 [shape = 's32[2]{0}', space=sflag, size = 0x8, scoped, tag = 'scoped memory for tpu_custom_call.1']
    #allocation11 [shape = 'u8[65536]{0}', space=vmem, size = 0x10000, scoped, tag = 'output window, operand 0, single buffered']
    %9 = vsyncpa [#allocation4], 0
    %10 = vsyncpa [#allocation7], 0
    %s11 = scalar_lea.sflag [#allocation7], 1
    %12 = vsyncpa %s11, 0
    %13 = vsyncpa [#allocation10], 0
    %s14 = scalar_lea.sflag [#allocation10], 1
    %15 = vsyncpa %s14, 0
    %16 = vsyncpa [#allocation5], 0
    loop: start=0, step=1, limit=4
    $region2: #{tpu_custom_call.1} parent=1 // loop_pre_header
      _
    $region3: #{tpu_custom_call.1} parent=1 // loop_header
      %s18 = sphi 0, %s22
      %p19 = scmp.ge.s32.totalorder %s18, 4
      %s25 = sphi 0, %s37
      %s26 = sphi 0, %s33
      %s27 = sphi 0, %s25
      %s28 = sphi 0, %s26
      %s29 = sphi 0, %s27
      %s30 = sphi 0, %s28
      %s40 = sphi 0, %s42
      %s43 = sphi 0, %s40
      %s44 = sphi 0, %s43
      %s60 = sphi 0, %s44
      %s66 = sphi 0, %s68
      %s69 = sphi 0, %s66
      %s70 = sphi 0, %s69
      %s86 = sphi 0, %s70
      %s92 = sphi 0, %s94
      %s95 = sphi 0, %s92
      %s96 = sphi 0, %s95
      %s112 = sphi 0, %s96
      %s118 = sphi 0, %s120
      %s121 = sphi 0, %s118
      %s122 = sphi 0, %s121
      %s138 = sphi 0, %s122
      %s144 = sphi 0, %s146
      %s147 = sphi 0, %s144
      %s148 = sphi 0, %s147
      %s164 = sphi 0, %s148
    $region4: #{tpu_custom_call.1} parent=1 // loop_header_branch
      %21 = sbr.rel (%p19) target = $region8
    $region5: #{tpu_custom_call.1} parent=1 // loop_body
      %s23 = ssub.s32 %s18, 1
      %s24 = ssub.s32 %s18, 2
      %s31 = sadd.s32 1, %s26
      %p32 = scmp.ge.s32.totalorder %s31, 2
      %s33 = scalar_select %p32, 0, %s31
      %s34 = sadd.s32 1, %s25
      %s35 = scalar_select %p32, %s34, %s25
      %p36 = scmp.ge.s32.totalorder %s35, 1
      %s37 = scalar_select %p36, 0, %s35
      %s38 = ssub.s32 %s25, %s37
      %p39 = scmp.eq.s32.totalorder %s38, 0
      %s41 = sadd.s32 %s40, 1
      %s42 = scalar_select %p39, %s40, %s41
      %p45 = pneg %p39
      %p46 = scmp.eq.s32.totalorder %s18, 1
      %p47 = por %p45, %p46
      %p48 = scmp.ne.s32.totalorder %s40, %s43
      %p49 = scmp.eq.s32.totalorder %s18, 0
      %p50 = por %p48, %p49
      %p51 = scmp.ne.s32.totalorder %s40, %s43
      %p52 = scmp.eq.s32.totalorder %s23, 1
      %p53 = por %p51, %p52
      %p54 = scmp.ne.s32.totalorder %s43, %s44
      %p55 = scmp.eq.s32.totalorder %s23, 0
      %p56 = por %p54, %p55
      %p57 = scmp.ne.s32.totalorder %s43, %s44
      %p58 = scmp.eq.s32.totalorder %s24, 1
      %p59 = por %p57, %p58
      %p61 = scmp.ne.s32.totalorder %s44, %s60
      %p62 = scmp.eq.s32.totalorder %s24, 0
      %p63 = por %p61, %p62
      %s64 = ssub.s32 %s26, %s33
      %p65 = scmp.eq.s32.totalorder %s64, 0
      %s67 = sadd.s32 %s66, 1
      %s68 = scalar_select %p65, %s66, %s67
      %p71 = pneg %p65
      %p72 = scmp.eq.s32.totalorder %s18, 1
      %p73 = por %p71, %p72
      %p74 = scmp.ne.s32.totalorder %s66, %s69
      %p75 = scmp.eq.s32.totalorder %s18, 0
      %p76 = por %p74, %p75
      %p77 = scmp.ne.s32.totalorder %s66, %s69
      %p78 = scmp.eq.s32.totalorder %s23, 1
      %p79 = por %p77, %p78
      %p80 = scmp.ne.s32.totalorder %s69, %s70
      %p81 = scmp.eq.s32.totalorder %s23, 0
      %p82 = por %p80, %p81
      %p83 = scmp.ne.s32.totalorder %s69, %s70
      %p84 = scmp.eq.s32.totalorder %s24, 1
      %p85 = por %p83, %p84
      %p87 = scmp.ne.s32.totalorder %s70, %s86
      %p88 = scmp.eq.s32.totalorder %s24, 0
      %p89 = por %p87, %p88
      %s90 = ssub.s32 %s26, %s33
      %p91 = scmp.eq.s32.totalorder %s90, 0
      %s93 = sadd.s32 %s92, 1
      %s94 = scalar_select %p91, %s92, %s93
      %p97 = pneg %p91
      %p98 = scmp.eq.s32.totalorder %s18, 1
      %p99 = por %p97, %p98
      %p100 = scmp.ne.s32.totalorder %s92, %s95
      %p101 = scmp.eq.s32.totalorder %s18, 0
      %p102 = por %p100, %p101
      %p103 = scmp.ne.s32.totalorder %s92, %s95
      %p104 = scmp.eq.s32.totalorder %s23, 1
      %p105 = por %p103, %p104
      %p106 = scmp.ne.s32.totalorder %s95, %s96
      %p107 = scmp.eq.s32.totalorder %s23, 0
      %p108 = por %p106, %p107
      %p109 = scmp.ne.s32.totalorder %s95, %s96
      %p110 = scmp.eq.s32.totalorder %s24, 1
      %p111 = por %p109, %p110
      %p113 = scmp.ne.s32.totalorder %s96, %s112
      %p114 = scmp.eq.s32.totalorder %s24, 0
      %p115 = por %p113, %p114
      %s116 = ssub.s32 %s26, %s33
      %p117 = scmp.eq.s32.totalorder %s116, 0
      %s119 = sadd.s32 %s118, 1
      %s120 = scalar_select %p117, %s118, %s119
      %p123 = pneg %p117
      %p124 = scmp.eq.s32.totalorder %s18, 1
      %p125 = por %p123, %p124
      %p126 = scmp.ne.s32.totalorder %s118, %s121
      %p127 = scmp.eq.s32.totalorder %s18, 0
      %p128 = por %p126, %p127
      %p129 = scmp.ne.s32.totalorder %s118, %s121
      %p130 = scmp.eq.s32.totalorder %s23, 1
      %p131 = por %p129, %p130
      %p132 = scmp.ne.s32.totalorder %s121, %s122
      %p133 = scmp.eq.s32.totalorder %s23, 0
      %p134 = por %p132, %p133
      %p135 = scmp.ne.s32.totalorder %s121, %s122
      %p136 = scmp.eq.s32.totalorder %s24, 1
      %p137 = por %p135, %p136
      %p139 = scmp.ne.s32.totalorder %s122, %s138
      %p140 = scmp.eq.s32.totalorder %s24, 0
      %p141 = por %p139, %p140
      %s142 = ssub.s32 %s25, %s37
      %p143 = scmp.eq.s32.totalorder %s142, 0
      %s145 = sadd.s32 %s144, 1
      %s146 = scalar_select %p143, %s144, %s145
      %p149 = pneg %p143
      %p150 = scmp.eq.s32.totalorder %s18, 1
      %p151 = por %p149, %p150
      %p152 = scmp.ne.s32.totalorder %s144, %s147
      %p153 = scmp.eq.s32.totalorder %s18, 0
      %p154 = por %p152, %p153
      %p155 = scmp.ne.s32.totalorder %s144, %s147
      %p156 = scmp.eq.s32.totalorder %s23, 1
      %p157 = por %p155, %p156
      %p158 = scmp.ne.s32.totalorder %s147, %s148
      %p159 = scmp.eq.s32.totalorder %s23, 0
      %p160 = por %p158, %p159
      %p161 = scmp.ne.s32.totalorder %s147, %s148
      %p162 = scmp.eq.s32.totalorder %s24, 1
      %p163 = por %p161, %p162
      %p165 = scmp.ne.s32.totalorder %s148, %s164
      %p166 = scmp.eq.s32.totalorder %s24, 0
      %p167 = por %p165, %p166
      %p168 = scmp.le.s32.totalorder 1, %s18
      %p169 = scmp.lt.s32.totalorder %s18, 3
      %p170 = pnand %p168, %p169
      %p171 = pneg %p170
      // Predicated region
      $region9: #{tpu_custom_call.1} parent=5 // pred_check
        _
      $region10: #{tpu_custom_call.1} parent=5 // pred_check_branch
        %173 = sbr.rel (%p170) target = $region12
      $region11: #{tpu_custom_call.1} parent=5 // pred_region
        %s174 = ssub.s32 %s18, 1
        // Predicated region
        $region13: #{tpu_custom_call.1} parent=11 // pred_check
          %p175 = pneg %p56
        $region14: #{tpu_custom_call.1} parent=11 // pred_check_branch
          %177 = sbr.rel (%p175) target = $region16
        $region15: #{tpu_custom_call.1} parent=11 // pred_region
          %s178 = smul.u32 16, %s27
          %s180 = ssub.s32 2048, 2048
          %181 = vsyncadd [#allocation4], %s180
          %s182 = smul.addr %s178, 2
          %s183 = smul.addr %s182, 64
          %s184 = scalar_lea.hbm %s0, %s183
          %s185 = sshll.u32 [#allocation3], 4
          %s186 = int_to_ptr.vmem [resolvable:$true] %s185
          %191 = dma.hbm_to_vmem [thread:$0]  %s184, 2048, %s186, [#allocation4], 128, 128, 8
        $region16: #{tpu_custom_call.1} parent=11 // pred_fallthru
          _
      $region12: #{tpu_custom_call.1} parent=5 // pred_fallthru
        _
      %p192 = scmp.lt.s32.totalorder %s18, 2
      // Predicated region
      $region17: #{tpu_custom_call.1} parent=5 // pred_check
        %p193 = pneg %p192
      $region18: #{tpu_custom_call.1} parent=5 // pred_check_branch
        %195 = sbr.rel (%p193) target = $region20
      $region19: #{tpu_custom_call.1} parent=5 // pred_region
        // Predicated region
        $region21: #{tpu_custom_call.1} parent=19 // pred_check
          %p196 = pneg %p76
        $region22: #{tpu_custom_call.1} parent=19 // pred_check_branch
          %198 = sbr.rel (%p196) target = $region24
        $region23: #{tpu_custom_call.1} parent=19 // pred_region
          %s199 = sand.u32 %s18, 1
          %s200 = scalar_lea.sflag [#allocation7], %s199
          %s201 = sand.u32 %s66, 1
          %s202 = smul.addr %s201, 256
          %s203 = scalar_lea.vmem [#allocation6], %s202
          %s204 = smul.u32 2, %s26
          %s206 = ssub.s32 4096, 4096
          %207 = vsyncadd %s200, %s206
          %s208 = smul.addr %s204, 64
          %s209 = scalar_lea.hbm %s1, %s208
          %s210 = sshll.u32 %s203, 4
          %s211 = int_to_ptr.vmem [resolvable:$true] %s210
          %216 = dma.hbm_to_vmem [thread:$0]  %s209, 4096, %s211, %s200, 256, 128, 8
        $region24: #{tpu_custom_call.1} parent=19 // pred_fallthru
          _
        // Predicated region
        $region25: #{tpu_custom_call.1} parent=19 // pred_check
          %p217 = pneg %p102
        $region26: #{tpu_custom_call.1} parent=19 // pred_check_branch
          %219 = sbr.rel (%p217) target = $region28
        $region27: #{tpu_custom_call.1} parent=19 // pred_region
          %s220 = sand.u32 %s18, 1
          %s221 = scalar_lea.sflag [#allocation7], %s220
          %s222 = sand.u32 %s92, 1
          %s223 = smul.addr %s222, 256
          %s224 = scalar_lea.vmem [#allocation8], %s223
          %s225 = smul.u32 2, %s26
          %s227 = ssub.s32 4096, 4096
          %228 = vsyncadd %s221, %s227
          %s229 = smul.addr %s225, 64
          %s230 = scalar_lea.hbm %s2, %s229
          %s231 = sshll.u32 %s224, 4
          %s232 = int_to_ptr.vmem [resolvable:$true] %s231
          %237 = dma.hbm_to_vmem [thread:$0]  %s230, 4096, %s232, %s221, 256, 128, 8
        $region28: #{tpu_custom_call.1} parent=19 // pred_fallthru
          _
        // Predicated region
        $region29: #{tpu_custom_call.1} parent=19 // pred_check
          %p238 = pneg %p128
        $region30: #{tpu_custom_call.1} parent=19 // pred_check_branch
          %240 = sbr.rel (%p238) target = $region32
        $region31: #{tpu_custom_call.1} parent=19 // pred_region
          %s241 = sand.u32 %s118, 1
          %s242 = scalar_lea.sflag [#allocation10], %s241
          %s243 = sand.u32 %s118, 1
          %s244 = smul.addr %s243, 256
          %s245 = scalar_lea.vmem [#allocation9], %s244
          %s246 = smul.u32 32, %s26
          %s248 = ssub.s32 4096, 4096
          %249 = vsyncadd %s242, %s248
          %s250 = smul.addr %s246, 2
          %s251 = smul.addr %s250, 64
          %s252 = scalar_lea.hbm %s3, %s251
          %s253 = sshll.u32 %s245, 4
          %s254 = int_to_ptr.vmem [resolvable:$true] %s253
          %259 = dma.hbm_to_vmem [thread:$0]  %s252, 4096, %s254, %s242, 128, 128, 8
        $region32: #{tpu_custom_call.1} parent=19 // pred_fallthru
          _
      $region20: #{tpu_custom_call.1} parent=5 // pred_fallthru
        _
      %p260 = scmp.le.s32.totalorder 1, %s18
      %p261 = scmp.lt.s32.totalorder %s18, 3
      %p262 = pnand %p260, %p261
      %p263 = pneg %p262
      // Predicated region
      $region33: #{tpu_custom_call.1} parent=5 // pred_check
        _
      $region34: #{tpu_custom_call.1} parent=5 // pred_check_branch
        %265 = sbr.rel (%p262) target = $region36
      $region35: #{tpu_custom_call.1} parent=5 // pred_region
        %s266 = ssub.s32 %s18, 1
        // Predicated region
        $region37: #{tpu_custom_call.1} parent=35 // pred_check
          %p267 = pneg %p56
        $region38: #{tpu_custom_call.1} parent=35 // pred_check_branch
          %269 = sbr.rel (%p267) target = $region40
        $region39: #{tpu_custom_call.1} parent=35 // pred_region
          %270 = dma.done [#allocation4], 2048
        $region40: #{tpu_custom_call.1} parent=35 // pred_fallthru
          _
        %s271 = sand.u32 %s23, 1
        %s272 = scalar_lea.sflag [#allocation7], %s271
        %s273 = sand.u32 %s69, 1
        %s274 = smul.addr %s273, 256
        %s275 = scalar_lea.vmem [#allocation6], %s274
        // Predicated region
        $region41: #{tpu_custom_call.1} parent=35 // pred_check
          %p276 = pneg %p82
        $region42: #{tpu_custom_call.1} parent=35 // pred_check_branch
          %278 = sbr.rel (%p276) target = $region44
        $region43: #{tpu_custom_call.1} parent=35 // pred_region
          %279 = dma.done %s272, 4096
        $region44: #{tpu_custom_call.1} parent=35 // pred_fallthru
          _
        %s280 = sand.u32 %s23, 1
        %s281 = scalar_lea.sflag [#allocation7], %s280
        %s282 = sand.u32 %s95, 1
        %s283 = smul.addr %s282, 256
        %s284 = scalar_lea.vmem [#allocation8], %s283
        // Predicated region
        $region45: #{tpu_custom_call.1} parent=35 // pred_check
          %p285 = pneg %p108
        $region46: #{tpu_custom_call.1} parent=35 // pred_check_branch
          %287 = sbr.rel (%p285) target = $region48
        $region47: #{tpu_custom_call.1} parent=35 // pred_region
          %288 = dma.done %s281, 4096
        $region48: #{tpu_custom_call.1} parent=35 // pred_fallthru
          _
        %s289 = sand.u32 %s121, 1
        %s290 = scalar_lea.sflag [#allocation10], %s289
        %s291 = sand.u32 %s121, 1
        %s292 = smul.addr %s291, 256
        %s293 = scalar_lea.vmem [#allocation9], %s292
        // Predicated region
        $region49: #{tpu_custom_call.1} parent=35 // pred_check
          %p294 = pneg %p134
        $region50: #{tpu_custom_call.1} parent=35 // pred_check_branch
          %296 = sbr.rel (%p294) target = $region52
        $region51: #{tpu_custom_call.1} parent=35 // pred_region
          %297 = dma.done %s290, 4096
        $region52: #{tpu_custom_call.1} parent=35 // pred_fallthru
          _
        %p298 = pneg %p56
        %p299 = pneg %p53
        %s300 = sand.u32 %s23, 1
        %s301 = scalar_lea.sflag [#allocation7], %s300
        %s302 = sand.u32 %s69, 1
        %s303 = smul.addr %s302, 256
        %s304 = scalar_lea.vmem [#allocation6], %s303
        %p305 = pneg %p82
        %p306 = pneg %p79
        %s307 = sand.u32 %s23, 1
        %s308 = scalar_lea.sflag [#allocation7], %s307
        %s309 = sand.u32 %s95, 1
        %s310 = smul.addr %s309, 256
        %s311 = scalar_lea.vmem [#allocation8], %s310
        %p312 = pneg %p108
        %p313 = pneg %p105
        %s314 = sand.u32 %s121, 1
        %s315 = scalar_lea.sflag [#allocation10], %s314
        %s316 = sand.u32 %s121, 1
        %s317 = smul.addr %s316, 256
        %s318 = scalar_lea.vmem [#allocation9], %s317
        %p319 = pneg %p134
        %p320 = pneg %p131
        %p321 = pneg %p160
        %p322 = pneg %p157
        %s323 = smul.u32 16, %s27
        %s324 = smul.u32 2, %s28
        %s325 = smul.u32 2, %s28
        %s326 = smul.u32 32, %s28
        %s327 = smul.u32 16, %s27
        %v328 = vld [vmem:[#allocation3] sm:$0xff]
        %v329 = vld [vmem:[#allocation3 + $0x8] sm:$0xff]
        %v330 = vld [vmem:[#allocation3 + $0x10] sm:$0xff]
        %v331 = vld [vmem:[#allocation3 + $0x18] sm:$0xff]
        %v332 = vld [vmem:[#allocation3 + $0x20] sm:$0xff]
        %v333 = vld [vmem:[#allocation3 + $0x28] sm:$0xff]
        %v334 = vld [vmem:[#allocation3 + $0x30] sm:$0xff]
        %v335 = vld [vmem:[#allocation3 + $0x38] sm:$0xff]
        %v336 = vld [vmem:[#allocation3 + $0x40] sm:$0xff]
        %v337 = vld [vmem:[#allocation3 + $0x48] sm:$0xff]
        %v338 = vld [vmem:[#allocation3 + $0x50] sm:$0xff]
        %v339 = vld [vmem:[#allocation3 + $0x58] sm:$0xff]
        %v340 = vld [vmem:[#allocation3 + $0x60] sm:$0xff]
        %v341 = vld [vmem:[#allocation3 + $0x68] sm:$0xff]
        %v342 = vld [vmem:[#allocation3 + $0x70] sm:$0xff]
        %v343 = vld [vmem:[#allocation3 + $0x78] sm:$0xff]
        %v344 = vld [vmem:[%s275] sm:$0xff]
        %v345 = vld [vmem:[%s275 + $0x8] sm:$0xff]
        %v346 = vld [vmem:[%s275 + $0x10] sm:$0xff]
        %v347 = vld [vmem:[%s275 + $0x18] sm:$0xff]
        %v348 = vld [vmem:[%s275 + $0x20] sm:$0xff]
        %v349 = vld [vmem:[%s275 + $0x28] sm:$0xff]
        %v350 = vld [vmem:[%s275 + $0x30] sm:$0xff]
        %v351 = vld [vmem:[%s275 + $0x38] sm:$0xff]
        %v352 = vld [vmem:[%s275 + $0x40] sm:$0xff]
        %v353 = vld [vmem:[%s275 + $0x48] sm:$0xff]
        %v354 = vld [vmem:[%s275 + $0x50] sm:$0xff]
        %v355 = vld [vmem:[%s275 + $0x58] sm:$0xff]
        %v356 = vld [vmem:[%s275 + $0x60] sm:$0xff]
        %v357 = vld [vmem:[%s275 + $0x68] sm:$0xff]
        %v358 = vld [vmem:[%s275 + $0x70] sm:$0xff]
        %v359 = vld [vmem:[%s275 + $0x78] sm:$0xff]
        %v360 = vld [vmem:[%s275 + $0x80] sm:$0xff]
        %v361 = vld [vmem:[%s275 + $0x88] sm:$0xff]
        %v362 = vld [vmem:[%s275 + $0x90] sm:$0xff]
        %v363 = vld [vmem:[%s275 + $0x98] sm:$0xff]
        %v364 = vld [vmem:[%s275 + $0xa0] sm:$0xff]
        %v365 = vld [vmem:[%s275 + $0xa8] sm:$0xff]
        %v366 = vld [vmem:[%s275 + $0xb0] sm:$0xff]
        %v367 = vld [vmem:[%s275 + $0xb8] sm:$0xff]
        %v368 = vld [vmem:[%s275 + $0xc0] sm:$0xff]
        %v369 = vld [vmem:[%s275 + $0xc8] sm:$0xff]
        %v370 = vld [vmem:[%s275 + $0xd0] sm:$0xff]
        %v371 = vld [vmem:[%s275 + $0xd8] sm:$0xff]
        %v372 = vld [vmem:[%s275 + $0xe0] sm:$0xff]
        %v373 = vld [vmem:[%s275 + $0xe8] sm:$0xff]
        %v374 = vld [vmem:[%s275 + $0xf0] sm:$0xff]
        %v375 = vld [vmem:[%s275 + $0xf8] sm:$0xff]
        %v392 = vunpack.c.l.b16 %v328
        %v393 = vunpack.c.h.b16 %v328
        %v394 = vunpack.c.l.b16 %v329
        %v395 = vunpack.c.h.b16 %v329
        %v396 = vunpack.c.l.b16 %v330
        %v397 = vunpack.c.h.b16 %v330
        %v398 = vunpack.c.l.b16 %v331
        %v399 = vunpack.c.h.b16 %v331
        %v400 = vunpack.c.l.b16 %v332
        %v401 = vunpack.c.h.b16 %v332
        %v402 = vunpack.c.l.b16 %v333
        %v403 = vunpack.c.h.b16 %v333
        %v404 = vunpack.c.l.b16 %v334
        %v405 = vunpack.c.h.b16 %v334
        %v406 = vunpack.c.l.b16 %v335
        %v407 = vunpack.c.h.b16 %v335
        %v408 = vunpack.c.l.b16 %v336
        %v409 = vunpack.c.h.b16 %v336
        %v410 = vunpack.c.l.b16 %v337
        %v411 = vunpack.c.h.b16 %v337
        %v412 = vunpack.c.l.b16 %v338
        %v413 = vunpack.c.h.b16 %v338
        %v414 = vunpack.c.l.b16 %v339
        %v415 = vunpack.c.h.b16 %v339
        %v416 = vunpack.c.l.b16 %v340
        %v417 = vunpack.c.h.b16 %v340
        %v418 = vunpack.c.l.b16 %v341
        %v419 = vunpack.c.h.b16 %v341
        %v420 = vunpack.c.l.b16 %v342
        %v421 = vunpack.c.h.b16 %v342
        %v422 = vunpack.c.l.b16 %v343
        %v423 = vunpack.c.h.b16 %v343
        %v424 = vpack.c.b16 %v394, %v392
        %v425 = vpack.c.b16 %v395, %v393
        %v426 = vpack.c.b16 %v398, %v396
        %v427 = vpack.c.b16 %v399, %v397
        %v428 = vpack.c.b16 %v402, %v400
        %v429 = vpack.c.b16 %v403, %v401
        %v430 = vpack.c.b16 %v406, %v404
        %v431 = vpack.c.b16 %v407, %v405
        %v432 = vpack.c.b16 %v410, %v408
        %v433 = vpack.c.b16 %v411, %v409
        %v434 = vpack.c.b16 %v414, %v412
        %v435 = vpack.c.b16 %v415, %v413
        %v436 = vpack.c.b16 %v418, %v416
        %v437 = vpack.c.b16 %v419, %v417
        %v438 = vpack.c.b16 %v422, %v420
        %v439 = vpack.c.b16 %v423, %v421
        %v488 = vunpack.c.l.b16 %v344
        %v489 = vunpack.c.h.b16 %v344
        %v490 = vunpack.c.l.b16 %v345
        %v491 = vunpack.c.h.b16 %v345
        %v492 = vunpack.c.l.b16 %v346
        %v493 = vunpack.c.h.b16 %v346
        %v494 = vunpack.c.l.b16 %v347
        %v495 = vunpack.c.h.b16 %v347
        %v496 = vunpack.c.l.b16 %v348
        %v497 = vunpack.c.h.b16 %v348
        %v498 = vunpack.c.l.b16 %v349
        %v499 = vunpack.c.h.b16 %v349
        %v500 = vunpack.c.l.b16 %v350
        %v501 = vunpack.c.h.b16 %v350
        %v502 = vunpack.c.l.b16 %v351
        %v503 = vunpack.c.h.b16 %v351
        %v504 = vunpack.c.l.b16 %v352
        %v505 = vunpack.c.h.b16 %v352
        %v506 = vunpack.c.l.b16 %v353
        %v507 = vunpack.c.h.b16 %v353
        %v508 = vunpack.c.l.b16 %v354
        %v509 = vunpack.c.h.b16 %v354
        %v510 = vunpack.c.l.b16 %v355
        %v511 = vunpack.c.h.b16 %v355
        %v512 = vunpack.c.l.b16 %v356
        %v513 = vunpack.c.h.b16 %v356
        %v514 = vunpack.c.l.b16 %v357
        %v515 = vunpack.c.h.b16 %v357
        %v516 = vunpack.c.l.b16 %v358
        %v517 = vunpack.c.h.b16 %v358
        %v518 = vunpack.c.l.b16 %v359
        %v519 = vunpack.c.h.b16 %v359
        %v520 = vunpack.c.l.b16 %v360
        %v521 = vunpack.c.h.b16 %v360
        %v522 = vunpack.c.l.b16 %v361
        %v523 = vunpack.c.h.b16 %v361
        %v524 = vunpack.c.l.b16 %v362
        %v525 = vunpack.c.h.b16 %v362
        %v526 = vunpack.c.l.b16 %v363
        %v527 = vunpack.c.h.b16 %v363
        %v528 = vunpack.c.l.b16 %v364
        %v529 = vunpack.c.h.b16 %v364
        %v530 = vunpack.c.l.b16 %v365
        %v531 = vunpack.c.h.b16 %v365
        %v532 = vunpack.c.l.b16 %v366
        %v533 = vunpack.c.h.b16 %v366
        %v534 = vunpack.c.l.b16 %v367
        %v535 = vunpack.c.h.b16 %v367
        %v536 = vunpack.c.l.b16 %v368
        %v537 = vunpack.c.h.b16 %v368
        %v538 = vunpack.c.l.b16 %v369
        %v539 = vunpack.c.h.b16 %v369
        %v540 = vunpack.c.l.b16 %v370
        %v541 = vunpack.c.h.b16 %v370
        %v542 = vunpack.c.l.b16 %v371
        %v543 = vunpack.c.h.b16 %v371
        %v544 = vunpack.c.l.b16 %v372
        %v545 = vunpack.c.h.b16 %v372
        %v546 = vunpack.c.l.b16 %v373
        %v547 = vunpack.c.h.b16 %v373
        %v548 = vunpack.c.l.b16 %v374
        %v549 = vunpack.c.h.b16 %v374
        %v550 = vunpack.c.l.b16 %v375
        %v551 = vunpack.c.h.b16 %v375
        %v552 = vpack.c.b16 %v490, %v488
        %v553 = vpack.c.b16 %v491, %v489
        %v554 = vpack.c.b16 %v494, %v492
        %v555 = vpack.c.b16 %v495, %v493
        %v556 = vpack.c.b16 %v498, %v496
        %v557 = vpack.c.b16 %v499, %v497
        %v558 = vpack.c.b16 %v502, %v500
        %v559 = vpack.c.b16 %v503, %v501
        %v560 = vpack.c.b16 %v506, %v504
        %v561 = vpack.c.b16 %v507, %v505
        %v562 = vpack.c.b16 %v510, %v508
        %v563 = vpack.c.b16 %v511, %v509
        %v564 = vpack.c.b16 %v514, %v512
        %v565 = vpack.c.b16 %v515, %v513
        %v566 = vpack.c.b16 %v518, %v516
        %v567 = vpack.c.b16 %v519, %v517
        %v568 = vpack.c.b16 %v522, %v520
        %v569 = vpack.c.b16 %v523, %v521
        %v570 = vpack.c.b16 %v526, %v524
        %v571 = vpack.c.b16 %v527, %v525
        %v572 = vpack.c.b16 %v530, %v528
        %v573 = vpack.c.b16 %v531, %v529
        %v574 = vpack.c.b16 %v534, %v532
        %v575 = vpack.c.b16 %v535, %v533
        %v576 = vpack.c.b16 %v538, %v536
        %v577 = vpack.c.b16 %v539, %v537
        %v578 = vpack.c.b16 %v542, %v540
        %v579 = vpack.c.b16 %v543, %v541
        %v580 = vpack.c.b16 %v546, %v544
        %v581 = vpack.c.b16 %v547, %v545
        %v582 = vpack.c.b16 %v550, %v548
        %v583 = vpack.c.b16 %v551, %v549
        %616 = vmatprep.subr.bf16.mxu0 %v567
        %617 = vmatpush1.bf16.msra.mxu0 %v566
        %618 = vmatprep.subr.bf16.mxu0 %v565
        %619 = vmatpush1.bf16.msra.mxu0 %v564
        %620 = vmatprep.subr.bf16.mxu0 %v563
        %621 = vmatpush1.bf16.msra.mxu0 %v562
        %622 = vmatprep.subr.bf16.mxu0 %v561
        %623 = vmatpush1.bf16.msra.mxu0 %v560
        %624 = vmatprep.subr.bf16.mxu0 %v559
        %625 = vmatpush1.bf16.msra.mxu0 %v558
        %626 = vmatprep.subr.bf16.mxu0 %v557
        %627 = vmatpush1.bf16.msra.mxu0 %v556
        %628 = vmatprep.subr.bf16.mxu0 %v555
        %629 = vmatpush1.bf16.msra.mxu0 %v554
        %630 = vmatprep.subr.bf16.mxu0 %v553
        %631 = vmatpush1.bf16.msra.mxu0 %v552
        %632 = vmatprep.subr.bf16.mxu0 %v583
        %633 = vmatpush2.bf16.msra.mxu0 %v582
        %634 = vmatprep.subr.bf16.mxu0 %v581
        %635 = vmatpush2.bf16.msra.mxu0 %v580
        %636 = vmatprep.subr.bf16.mxu0 %v579
        %637 = vmatpush2.bf16.msra.mxu0 %v578
        %638 = vmatprep.subr.bf16.mxu0 %v577
        %639 = vmatpush2.bf16.msra.mxu0 %v576
        %640 = vmatprep.subr.bf16.mxu0 %v575
        %641 = vmatpush2.bf16.msra.mxu0 %v574
        %642 = vmatprep.subr.bf16.mxu0 %v573
        %643 = vmatpush2.bf16.msra.mxu0 %v572
        %644 = vmatprep.subr.bf16.mxu0 %v571
        %645 = vmatpush2.bf16.msra.mxu0 %v570
        %646 = vmatprep.subr.bf16.mxu0 %v569
        %647 = vmatpush2.bf16.msra.mxu0 %v568
        %648 = vmatprep.mubr.bf16.mxu0 %v425
        %649 = vmatmul.mubr.bf16.gmra.mxu0 %v424
        %v650 = vpop.f32.mrf.mxu0
        %v651 = vadd.f32 0.0, %v650
        %v652 = vpop.f32.mrf.mxu0
        %v653 = vadd.f32 0.0, %v652
        %v654 = vpop.f32.mrf.mxu0
        %v655 = vadd.f32 0.0, %v654
        %v656 = vpop.f32.mrf.mxu0
        %v657 = vadd.f32 0.0, %v656
        %658 = vmatprep.mubr.bf16.mxu0 %v427
        %659 = vmatmul.mubr.bf16.gmra.mxu0 %v426
        %v660 = vpop.f32.mrf.mxu0
        %v661 = vadd.f32 0.0, %v660
        %v662 = vpop.f32.mrf.mxu0
        %v663 = vadd.f32 0.0, %v662
        %v664 = vpop.f32.mrf.mxu0
        %v665 = vadd.f32 0.0, %v664
        %v666 = vpop.f32.mrf.mxu0
        %v667 = vadd.f32 0.0, %v666
        %668 = vmatprep.mubr.bf16.mxu0 %v429
        %669 = vmatmul.mubr.bf16.gmra.mxu0 %v428
        %v670 = vpop.f32.mrf.mxu0
        %v671 = vadd.f32 0.0, %v670
        %v672 = vpop.f32.mrf.mxu0
        %v673 = vadd.f32 0.0, %v672
        %v674 = vpop.f32.mrf.mxu0
        %v675 = vadd.f32 0.0, %v674
        %v676 = vpop.f32.mrf.mxu0
        %v677 = vadd.f32 0.0, %v676
        %678 = vmatprep.mubr.bf16.mxu0 %v431
        %679 = vmatmul.mubr.bf16.gmra.mxu0 %v430
        %v680 = vpop.f32.mrf.mxu0
        %v681 = vadd.f32 0.0, %v680
        %v682 = vpop.f32.mrf.mxu0
        %v683 = vadd.f32 0.0, %v682
        %v684 = vpop.f32.mrf.mxu0
        %v685 = vadd.f32 0.0, %v684
        %v686 = vpop.f32.mrf.mxu0
        %v687 = vadd.f32 0.0, %v686
        %688 = vmatprep.mubr.bf16.mxu0 %v433
        %689 = vmatmul.mubr.bf16.gmra.mxu0 %v432
        %v690 = vpop.f32.mrf.mxu0
        %v691 = vadd.f32 0.0, %v690
        %v692 = vpop.f32.mrf.mxu0
        %v693 = vadd.f32 0.0, %v692
        %v694 = vpop.f32.mrf.mxu0
        %v695 = vadd.f32 0.0, %v694
        %v696 = vpop.f32.mrf.mxu0
        %v697 = vadd.f32 0.0, %v696
        %698 = vmatprep.mubr.bf16.mxu0 %v435
        %699 = vmatmul.mubr.bf16.gmra.mxu0 %v434
        %v700 = vpop.f32.mrf.mxu0
        %v701 = vadd.f32 0.0, %v700
        %v702 = vpop.f32.mrf.mxu0
        %v703 = vadd.f32 0.0, %v702
        %v704 = vpop.f32.mrf.mxu0
        %v705 = vadd.f32 0.0, %v704
        %v706 = vpop.f32.mrf.mxu0
        %v707 = vadd.f32 0.0, %v706
        %708 = vmatprep.mubr.bf16.mxu0 %v437
        %709 = vmatmul.mubr.bf16.gmra.mxu0 %v436
        %v710 = vpop.f32.mrf.mxu0
        %v711 = vadd.f32 0.0, %v710
        %v712 = vpop.f32.mrf.mxu0
        %v713 = vadd.f32 0.0, %v712
        %v714 = vpop.f32.mrf.mxu0
        %v715 = vadd.f32 0.0, %v714
        %v716 = vpop.f32.mrf.mxu0
        %v717 = vadd.f32 0.0, %v716
        %718 = vmatprep.mubr.bf16.mxu0 %v439
        %719 = vmatmul.mubr.bf16.gmra.mxu0 %v438
        %v720 = vpop.f32.mrf.mxu0
        %v721 = vadd.f32 0.0, %v720
        %v722 = vpop.f32.mrf.mxu0
        %v723 = vadd.f32 0.0, %v722
        %v724 = vpop.f32.mrf.mxu0
        %v725 = vadd.f32 0.0, %v724
        %v726 = vpop.f32.mrf.mxu0
        %v727 = vadd.f32 0.0, %v726
        %728 = vdwg.mxu0
        %v729 = vld [vmem:[%s284] sm:$0xff]
        %v730 = vld [vmem:[%s284 + $0x8] sm:$0xff]
        %v731 = vld [vmem:[%s284 + $0x10] sm:$0xff]
        %v732 = vld [vmem:[%s284 + $0x18] sm:$0xff]
        %v733 = vld [vmem:[%s284 + $0x20] sm:$0xff]
        %v734 = vld [vmem:[%s284 + $0x28] sm:$0xff]
        %v735 = vld [vmem:[%s284 + $0x30] sm:$0xff]
        %v736 = vld [vmem:[%s284 + $0x38] sm:$0xff]
        %v737 = vld [vmem:[%s284 + $0x40] sm:$0xff]
        %v738 = vld [vmem:[%s284 + $0x48] sm:$0xff]
        %v739 = vld [vmem:[%s284 + $0x50] sm:$0xff]
        %v740 = vld [vmem:[%s284 + $0x58] sm:$0xff]
        %v741 = vld [vmem:[%s284 + $0x60] sm:$0xff]
        %v742 = vld [vmem:[%s284 + $0x68] sm:$0xff]
        %v743 = vld [vmem:[%s284 + $0x70] sm:$0xff]
        %v744 = vld [vmem:[%s284 + $0x78] sm:$0xff]
        %v745 = vld [vmem:[%s284 + $0x80] sm:$0xff]
        %v746 = vld [vmem:[%s284 + $0x88] sm:$0xff]
        %v747 = vld [vmem:[%s284 + $0x90] sm:$0xff]
        %v748 = vld [vmem:[%s284 + $0x98] sm:$0xff]
        %v749 = vld [vmem:[%s284 + $0xa0] sm:$0xff]
        %v750 = vld [vmem:[%s284 + $0xa8] sm:$0xff]
        %v751 = vld [vmem:[%s284 + $0xb0] sm:$0xff]
        %v752 = vld [vmem:[%s284 + $0xb8] sm:$0xff]
        %v753 = vld [vmem:[%s284 + $0xc0] sm:$0xff]
        %v754 = vld [vmem:[%s284 + $0xc8] sm:$0xff]
        %v755 = vld [vmem:[%s284 + $0xd0] sm:$0xff]
        %v756 = vld [vmem:[%s284 + $0xd8] sm:$0xff]
        %v757 = vld [vmem:[%s284 + $0xe0] sm:$0xff]
        %v758 = vld [vmem:[%s284 + $0xe8] sm:$0xff]
        %v759 = vld [vmem:[%s284 + $0xf0] sm:$0xff]
        %v760 = vld [vmem:[%s284 + $0xf8] sm:$0xff]
        %v793 = vunpack.c.l.b16 %v729
        %v794 = vunpack.c.h.b16 %v729
        %v795 = vunpack.c.l.b16 %v730
        %v796 = vunpack.c.h.b16 %v730
        %v797 = vunpack.c.l.b16 %v731
        %v798 = vunpack.c.h.b16 %v731
        %v799 = vunpack.c.l.b16 %v732
        %v800 = vunpack.c.h.b16 %v732
        %v801 = vunpack.c.l.b16 %v733
        %v802 = vunpack.c.h.b16 %v733
        %v803 = vunpack.c.l.b16 %v734
        %v804 = vunpack.c.h.b16 %v734
        %v805 = vunpack.c.l.b16 %v735
        %v806 = vunpack.c.h.b16 %v735
        %v807 = vunpack.c.l.b16 %v736
        %v808 = vunpack.c.h.b16 %v736
        %v809 = vunpack.c.l.b16 %v737
        %v810 = vunpack.c.h.b16 %v737
        %v811 = vunpack.c.l.b16 %v738
        %v812 = vunpack.c.h.b16 %v738
        %v813 = vunpack.c.l.b16 %v739
        %v814 = vunpack.c.h.b16 %v739
        %v815 = vunpack.c.l.b16 %v740
        %v816 = vunpack.c.h.b16 %v740
        %v817 = vunpack.c.l.b16 %v741
        %v818 = vunpack.c.h.b16 %v741
        %v819 = vunpack.c.l.b16 %v742
        %v820 = vunpack.c.h.b16 %v742
        %v821 = vunpack.c.l.b16 %v743
        %v822 = vunpack.c.h.b16 %v743
        %v823 = vunpack.c.l.b16 %v744
        %v824 = vunpack.c.h.b16 %v744
        %v825 = vunpack.c.l.b16 %v745
        %v826 = vunpack.c.h.b16 %v745
        %v827 = vunpack.c.l.b16 %v746
        %v828 = vunpack.c.h.b16 %v746
        %v829 = vunpack.c.l.b16 %v747
        %v830 = vunpack.c.h.b16 %v747
        %v831 = vunpack.c.l.b16 %v748
        %v832 = vunpack.c.h.b16 %v748
        %v833 = vunpack.c.l.b16 %v749
        %v834 = vunpack.c.h.b16 %v749
        %v835 = vunpack.c.l.b16 %v750
        %v836 = vunpack.c.h.b16 %v750
        %v837 = vunpack.c.l.b16 %v751
        %v838 = vunpack.c.h.b16 %v751
        %v839 = vunpack.c.l.b16 %v752
        %v840 = vunpack.c.h.b16 %v752
        %v841 = vunpack.c.l.b16 %v753
        %v842 = vunpack.c.h.b16 %v753
        %v843 = vunpack.c.l.b16 %v754
        %v844 = vunpack.c.h.b16 %v754
        %v845 = vunpack.c.l.b16 %v755
        %v846 = vunpack.c.h.b16 %v755
        %v847 = vunpack.c.l.b16 %v756
        %v848 = vunpack.c.h.b16 %v756
        %v849 = vunpack.c.l.b16 %v757
        %v850 = vunpack.c.h.b16 %v757
        %v851 = vunpack.c.l.b16 %v758
        %v852 = vunpack.c.h.b16 %v758
        %v853 = vunpack.c.l.b16 %v759
        %v854 = vunpack.c.h.b16 %v759
        %v855 = vunpack.c.l.b16 %v760
        %v856 = vunpack.c.h.b16 %v760
        %v857 = vpack.c.b16 %v795, %v793
        %v858 = vpack.c.b16 %v796, %v794
        %v859 = vpack.c.b16 %v799, %v797
        %v860 = vpack.c.b16 %v800, %v798
        %v861 = vpack.c.b16 %v803, %v801
        %v862 = vpack.c.b16 %v804, %v802
        %v863 = vpack.c.b16 %v807, %v805
        %v864 = vpack.c.b16 %v808, %v806
        %v865 = vpack.c.b16 %v811, %v809
        %v866 = vpack.c.b16 %v812, %v810
        %v867 = vpack.c.b16 %v815, %v813
        %v868 = vpack.c.b16 %v816, %v814
        %v869 = vpack.c.b16 %v819, %v817
        %v870 = vpack.c.b16 %v820, %v818
        %v871 = vpack.c.b16 %v823, %v821
        %v872 = vpack.c.b16 %v824, %v822
        %v873 = vpack.c.b16 %v827, %v825
        %v874 = vpack.c.b16 %v828, %v826
        %v875 = vpack.c.b16 %v831, %v829
        %v876 = vpack.c.b16 %v832, %v830
        %v877 = vpack.c.b16 %v835, %v833
        %v878 = vpack.c.b16 %v836, %v834
        %v879 = vpack.c.b16 %v839, %v837
        %v880 = vpack.c.b16 %v840, %v838
        %v881 = vpack.c.b16 %v843, %v841
        %v882 = vpack.c.b16 %v844, %v842
        %v883 = vpack.c.b16 %v847, %v845
        %v884 = vpack.c.b16 %v848, %v846
        %v885 = vpack.c.b16 %v851, %v849
        %v886 = vpack.c.b16 %v852, %v850
        %v887 = vpack.c.b16 %v855, %v853
        %v888 = vpack.c.b16 %v856, %v854
        %921 = vmatprep.subr.bf16.mxu0 %v872
        %922 = vmatpush1.bf16.msra.mxu0 %v871
        %923 = vmatprep.subr.bf16.mxu0 %v870
        %924 = vmatpush1.bf16.msra.mxu0 %v869
        %925 = vmatprep.subr.bf16.mxu0 %v868
        %926 = vmatpush1.bf16.msra.mxu0 %v867
        %927 = vmatprep.subr.bf16.mxu0 %v866
        %928 = vmatpush1.bf16.msra.mxu0 %v865
        %929 = vmatprep.subr.bf16.mxu0 %v864
        %930 = vmatpush1.bf16.msra.mxu0 %v863
        %931 = vmatprep.subr.bf16.mxu0 %v862
        %932 = vmatpush1.bf16.msra.mxu0 %v861
        %933 = vmatprep.subr.bf16.mxu0 %v860
        %934 = vmatpush1.bf16.msra.mxu0 %v859
        %935 = vmatprep.subr.bf16.mxu0 %v858
        %936 = vmatpush1.bf16.msra.mxu0 %v857
        %937 = vmatprep.subr.bf16.mxu0 %v888
        %938 = vmatpush2.bf16.msra.mxu0 %v887
        %939 = vmatprep.subr.bf16.mxu0 %v886
        %940 = vmatpush2.bf16.msra.mxu0 %v885
        %941 = vmatprep.subr.bf16.mxu0 %v884
        %942 = vmatpush2.bf16.msra.mxu0 %v883
        %943 = vmatprep.subr.bf16.mxu0 %v882
        %944 = vmatpush2.bf16.msra.mxu0 %v881
        %945 = vmatprep.subr.bf16.mxu0 %v880
        %946 = vmatpush2.bf16.msra.mxu0 %v879
        %947 = vmatprep.subr.bf16.mxu0 %v878
        %948 = vmatpush2.bf16.msra.mxu0 %v877
        %949 = vmatprep.subr.bf16.mxu0 %v876
        %950 = vmatpush2.bf16.msra.mxu0 %v875
        %951 = vmatprep.subr.bf16.mxu0 %v874
        %952 = vmatpush2.bf16.msra.mxu0 %v873
        %953 = vmatprep.mubr.bf16.mxu0 %v425
        %954 = vmatmul.mubr.bf16.gmra.mxu0 %v424
        %v955 = vpop.f32.mrf.mxu0
        %v956 = vadd.f32 0.0, %v955
        %v957 = vpop.f32.mrf.mxu0
        %v958 = vadd.f32 0.0, %v957
        %v959 = vpop.f32.mrf.mxu0
        %v960 = vadd.f32 0.0, %v959
        %v961 = vpop.f32.mrf.mxu0
        %v962 = vadd.f32 0.0, %v961
        %963 = vmatprep.mubr.bf16.mxu0 %v427
        %964 = vmatmul.mubr.bf16.gmra.mxu0 %v426
        %v965 = vpop.f32.mrf.mxu0
        %v966 = vadd.f32 0.0, %v965
        %v967 = vpop.f32.mrf.mxu0
        %v968 = vadd.f32 0.0, %v967
        %v969 = vpop.f32.mrf.mxu0
        %v970 = vadd.f32 0.0, %v969
        %v971 = vpop.f32.mrf.mxu0
        %v972 = vadd.f32 0.0, %v971
        %973 = vmatprep.mubr.bf16.mxu0 %v429
        %974 = vmatmul.mubr.bf16.gmra.mxu0 %v428
        %v975 = vpop.f32.mrf.mxu0
        %v976 = vadd.f32 0.0, %v975
        %v977 = vpop.f32.mrf.mxu0
        %v978 = vadd.f32 0.0, %v977
        %v979 = vpop.f32.mrf.mxu0
        %v980 = vadd.f32 0.0, %v979
        %v981 = vpop.f32.mrf.mxu0
        %v982 = vadd.f32 0.0, %v981
        %983 = vmatprep.mubr.bf16.mxu0 %v431
        %984 = vmatmul.mubr.bf16.gmra.mxu0 %v430
        %v985 = vpop.f32.mrf.mxu0
        %v986 = vadd.f32 0.0, %v985
        %v987 = vpop.f32.mrf.mxu0
        %v988 = vadd.f32 0.0, %v987
        %v989 = vpop.f32.mrf.mxu0
        %v990 = vadd.f32 0.0, %v989
        %v991 = vpop.f32.mrf.mxu0
        %v992 = vadd.f32 0.0, %v991
        %993 = vmatprep.mubr.bf16.mxu0 %v433
        %994 = vmatmul.mubr.bf16.gmra.mxu0 %v432
        %v995 = vpop.f32.mrf.mxu0
        %v996 = vadd.f32 0.0, %v995
        %v997 = vpop.f32.mrf.mxu0
        %v998 = vadd.f32 0.0, %v997
        %v999 = vpop.f32.mrf.mxu0
        %v1000 = vadd.f32 0.0, %v999
        %v1001 = vpop.f32.mrf.mxu0
        %v1002 = vadd.f32 0.0, %v1001
        %1003 = vmatprep.mubr.bf16.mxu0 %v435
        %1004 = vmatmul.mubr.bf16.gmra.mxu0 %v434
        %v1005 = vpop.f32.mrf.mxu0
        %v1006 = vadd.f32 0.0, %v1005
        %v1007 = vpop.f32.mrf.mxu0
        %v1008 = vadd.f32 0.0, %v1007
        %v1009 = vpop.f32.mrf.mxu0
        %v1010 = vadd.f32 0.0, %v1009
        %v1011 = vpop.f32.mrf.mxu0
        %v1012 = vadd.f32 0.0, %v1011
        %1013 = vmatprep.mubr.bf16.mxu0 %v437
        %1014 = vmatmul.mubr.bf16.gmra.mxu0 %v436
        %v1015 = vpop.f32.mrf.mxu0
        %v1016 = vadd.f32 0.0, %v1015
        %v1017 = vpop.f32.mrf.mxu0
        %v1018 = vadd.f32 0.0, %v1017
        %v1019 = vpop.f32.mrf.mxu0
        %v1020 = vadd.f32 0.0, %v1019
        %v1021 = vpop.f32.mrf.mxu0
        %v1022 = vadd.f32 0.0, %v1021
        %1023 = vmatprep.mubr.bf16.mxu0 %v439
        %1024 = vmatmul.mubr.bf16.gmra.mxu0 %v438
        %v1025 = vpop.f32.mrf.mxu0
        %v1026 = vadd.f32 0.0, %v1025
        %v1027 = vpop.f32.mrf.mxu0
        %v1028 = vadd.f32 0.0, %v1027
        %v1029 = vpop.f32.mrf.mxu0
        %v1030 = vadd.f32 0.0, %v1029
        %v1031 = vpop.f32.mrf.mxu0
        %v1032 = vadd.f32 0.0, %v1031
        %1033 = vdwg.mxu0
        %v1034 = vxor.u32 %v651, 2147483648
        %v1035 = vxor.u32 %v653, 2147483648
        %v1036 = vxor.u32 %v655, 2147483648
        %v1037 = vxor.u32 %v657, 2147483648
        %v1038 = vxor.u32 %v661, 2147483648
        %v1039 = vxor.u32 %v663, 2147483648
        %v1040 = vxor.u32 %v665, 2147483648
        %v1041 = vxor.u32 %v667, 2147483648
        %v1042 = vxor.u32 %v671, 2147483648
        %v1043 = vxor.u32 %v673, 2147483648
        %v1044 = vxor.u32 %v675, 2147483648
        %v1045 = vxor.u32 %v677, 2147483648
        %v1046 = vxor.u32 %v681, 2147483648
        %v1047 = vxor.u32 %v683, 2147483648
        %v1048 = vxor.u32 %v685, 2147483648
        %v1049 = vxor.u32 %v687, 2147483648
        %v1050 = vxor.u32 %v691, 2147483648
        %v1051 = vxor.u32 %v693, 2147483648
        %v1052 = vxor.u32 %v695, 2147483648
        %v1053 = vxor.u32 %v697, 2147483648
        %v1054 = vxor.u32 %v701, 2147483648
        %v1055 = vxor.u32 %v703, 2147483648
        %v1056 = vxor.u32 %v705, 2147483648
        %v1057 = vxor.u32 %v707, 2147483648
        %v1058 = vxor.u32 %v711, 2147483648
        %v1059 = vxor.u32 %v713, 2147483648
        %v1060 = vxor.u32 %v715, 2147483648
        %v1061 = vxor.u32 %v717, 2147483648
        %v1062 = vxor.u32 %v721, 2147483648
        %v1063 = vxor.u32 %v723, 2147483648
        %v1064 = vxor.u32 %v725, 2147483648
        %v1065 = vxor.u32 %v727, 2147483648
        %v1066 = vmul.f32 %v1034, 1.442695
        %v1067 = vpow.pop %v1066
        %v1068 = vmul.f32 %v1035, 1.442695
        %v1069 = vpow.pop %v1068
        %v1070 = vmul.f32 %v1036, 1.442695
        %v1071 = vpow.pop %v1070
        %v1072 = vmul.f32 %v1037, 1.442695
        %v1073 = vpow.pop %v1072
        %v1074 = vmul.f32 %v1038, 1.442695
        %v1075 = vpow.pop %v1074
        %v1076 = vmul.f32 %v1039, 1.442695
        %v1077 = vpow.pop %v1076
        %v1078 = vmul.f32 %v1040, 1.442695
        %v1079 = vpow.pop %v1078
        %v1080 = vmul.f32 %v1041, 1.442695
        %v1081 = vpow.pop %v1080
        %v1082 = vmul.f32 %v1042, 1.442695
        %v1083 = vpow.pop %v1082
        %v1084 = vmul.f32 %v1043, 1.442695
        %v1085 = vpow.pop %v1084
        %v1086 = vmul.f32 %v1044, 1.442695
        %v1087 = vpow.pop %v1086
        %v1088 = vmul.f32 %v1045, 1.442695
        %v1089 = vpow.pop %v1088
        %v1090 = vmul.f32 %v1046, 1.442695
        %v1091 = vpow.pop %v1090
        %v1092 = vmul.f32 %v1047, 1.442695
        %v1093 = vpow.pop %v1092
        %v1094 = vmul.f32 %v1048, 1.442695
        %v1095 = vpow.pop %v1094
        %v1096 = vmul.f32 %v1049, 1.442695
        %v1097 = vpow.pop %v1096
        %v1098 = vmul.f32 %v1050, 1.442695
        %v1099 = vpow.pop %v1098
        %v1100 = vmul.f32 %v1051, 1.442695
        %v1101 = vpow.pop %v1100
        %v1102 = vmul.f32 %v1052, 1.442695
        %v1103 = vpow.pop %v1102
        %v1104 = vmul.f32 %v1053, 1.442695
        %v1105 = vpow.pop %v1104
        %v1106 = vmul.f32 %v1054, 1.442695
        %v1107 = vpow.pop %v1106
        %v1108 = vmul.f32 %v1055, 1.442695
        %v1109 = vpow.pop %v1108
        %v1110 = vmul.f32 %v1056, 1.442695
        %v1111 = vpow.pop %v1110
        %v1112 = vmul.f32 %v1057, 1.442695
        %v1113 = vpow.pop %v1112
        %v1114 = vmul.f32 %v1058, 1.442695
        %v1115 = vpow.pop %v1114
        %v1116 = vmul.f32 %v1059, 1.442695
        %v1117 = vpow.pop %v1116
        %v1118 = vmul.f32 %v1060, 1.442695
        %v1119 = vpow.pop %v1118
        %v1120 = vmul.f32 %v1061, 1.442695
        %v1121 = vpow.pop %v1120
        %v1122 = vmul.f32 %v1062, 1.442695
        %v1123 = vpow.pop %v1122
        %v1124 = vmul.f32 %v1063, 1.442695
        %v1125 = vpow.pop %v1124
        %v1126 = vmul.f32 %v1064, 1.442695
        %v1127 = vpow.pop %v1126
        %v1128 = vmul.f32 %v1065, 1.442695
        %v1129 = vpow.pop %v1128
        %v1130 = vadd.f32 %v1067, 1.0
        %v1131 = vadd.f32 %v1069, 1.0
        %v1132 = vadd.f32 %v1071, 1.0
        %v1133 = vadd.f32 %v1073, 1.0
        %v1134 = vadd.f32 %v1075, 1.0
        %v1135 = vadd.f32 %v1077, 1.0
        %v1136 = vadd.f32 %v1079, 1.0
        %v1137 = vadd.f32 %v1081, 1.0
        %v1138 = vadd.f32 %v1083, 1.0
        %v1139 = vadd.f32 %v1085, 1.0
        %v1140 = vadd.f32 %v1087, 1.0
        %v1141 = vadd.f32 %v1089, 1.0
        %v1142 = vadd.f32 %v1091, 1.0
        %v1143 = vadd.f32 %v1093, 1.0
        %v1144 = vadd.f32 %v1095, 1.0
        %v1145 = vadd.f32 %v1097, 1.0
        %v1146 = vadd.f32 %v1099, 1.0
        %v1147 = vadd.f32 %v1101, 1.0
        %v1148 = vadd.f32 %v1103, 1.0
        %v1149 = vadd.f32 %v1105, 1.0
        %v1150 = vadd.f32 %v1107, 1.0
        %v1151 = vadd.f32 %v1109, 1.0
        %v1152 = vadd.f32 %v1111, 1.0
        %v1153 = vadd.f32 %v1113, 1.0
        %v1154 = vadd.f32 %v1115, 1.0
        %v1155 = vadd.f32 %v1117, 1.0
        %v1156 = vadd.f32 %v1119, 1.0
        %v1157 = vadd.f32 %v1121, 1.0
        %v1158 = vadd.f32 %v1123, 1.0
        %v1159 = vadd.f32 %v1125, 1.0
        %v1160 = vadd.f32 %v1127, 1.0
        %v1161 = vadd.f32 %v1129, 1.0
        %v1162 = vrcp.pop %v1130
        %v1163 = vmul.f32 1.0, %v1162
        %v1164 = vrcp.pop %v1131
        %v1165 = vmul.f32 1.0, %v1164
        %v1166 = vrcp.pop %v1132
        %v1167 = vmul.f32 1.0, %v1166
        %v1168 = vrcp.pop %v1133
        %v1169 = vmul.f32 1.0, %v1168
        %v1170 = vrcp.pop %v1134
        %v1171 = vmul.f32 1.0, %v1170
        %v1172 = vrcp.pop %v1135
        %v1173 = vmul.f32 1.0, %v1172
        %v1174 = vrcp.pop %v1136
        %v1175 = vmul.f32 1.0, %v1174
        %v1176 = vrcp.pop %v1137
        %v1177 = vmul.f32 1.0, %v1176
        %v1178 = vrcp.pop %v1138
        %v1179 = vmul.f32 1.0, %v1178
        %v1180 = vrcp.pop %v1139
        %v1181 = vmul.f32 1.0, %v1180
        %v1182 = vrcp.pop %v1140
        %v1183 = vmul.f32 1.0, %v1182
        %v1184 = vrcp.pop %v1141
        %v1185 = vmul.f32 1.0, %v1184
        %v1186 = vrcp.pop %v1142
        %v1187 = vmul.f32 1.0, %v1186
        %v1188 = vrcp.pop %v1143
        %v1189 = vmul.f32 1.0, %v1188
        %v1190 = vrcp.pop %v1144
        %v1191 = vmul.f32 1.0, %v1190
        %v1192 = vrcp.pop %v1145
        %v1193 = vmul.f32 1.0, %v1192
        %v1194 = vrcp.pop %v1146
        %v1195 = vmul.f32 1.0, %v1194
        %v1196 = vrcp.pop %v1147
        %v1197 = vmul.f32 1.0, %v1196
        %v1198 = vrcp.pop %v1148
        %v1199 = vmul.f32 1.0, %v1198
        %v1200 = vrcp.pop %v1149
        %v1201 = vmul.f32 1.0, %v1200
        %v1202 = vrcp.pop %v1150
        %v1203 = vmul.f32 1.0, %v1202
        %v1204 = vrcp.pop %v1151
        %v1205 = vmul.f32 1.0, %v1204
        %v1206 = vrcp.pop %v1152
        %v1207 = vmul.f32 1.0, %v1206
        %v1208 = vrcp.pop %v1153
        %v1209 = vmul.f32 1.0, %v1208
        %v1210 = vrcp.pop %v1154
        %v1211 = vmul.f32 1.0, %v1210
        %v1212 = vrcp.pop %v1155
        %v1213 = vmul.f32 1.0, %v1212
        %v1214 = vrcp.pop %v1156
        %v1215 = vmul.f32 1.0, %v1214
        %v1216 = vrcp.pop %v1157
        %v1217 = vmul.f32 1.0, %v1216
        %v1218 = vrcp.pop %v1158
        %v1219 = vmul.f32 1.0, %v1218
        %v1220 = vrcp.pop %v1159
        %v1221 = vmul.f32 1.0, %v1220
        %v1222 = vrcp.pop %v1160
        %v1223 = vmul.f32 1.0, %v1222
        %v1224 = vrcp.pop %v1161
        %v1225 = vmul.f32 1.0, %v1224
        %v1226 = vmul.f32 %v651, %v1163
        %v1227 = vmul.f32 %v653, %v1165
        %v1228 = vmul.f32 %v655, %v1167
        %v1229 = vmul.f32 %v657, %v1169
        %v1230 = vmul.f32 %v661, %v1171
        %v1231 = vmul.f32 %v663, %v1173
        %v1232 = vmul.f32 %v665, %v1175
        %v1233 = vmul.f32 %v667, %v1177
        %v1234 = vmul.f32 %v671, %v1179
        %v1235 = vmul.f32 %v673, %v1181
        %v1236 = vmul.f32 %v675, %v1183
        %v1237 = vmul.f32 %v677, %v1185
        %v1238 = vmul.f32 %v681, %v1187
        %v1239 = vmul.f32 %v683, %v1189
        %v1240 = vmul.f32 %v685, %v1191
        %v1241 = vmul.f32 %v687, %v1193
        %v1242 = vmul.f32 %v691, %v1195
        %v1243 = vmul.f32 %v693, %v1197
        %v1244 = vmul.f32 %v695, %v1199
        %v1245 = vmul.f32 %v697, %v1201
        %v1246 = vmul.f32 %v701, %v1203
        %v1247 = vmul.f32 %v703, %v1205
        %v1248 = vmul.f32 %v705, %v1207
        %v1249 = vmul.f32 %v707, %v1209
        %v1250 = vmul.f32 %v711, %v1211
        %v1251 = vmul.f32 %v713, %v1213
        %v1252 = vmul.f32 %v715, %v1215
        %v1253 = vmul.f32 %v717, %v1217
        %v1254 = vmul.f32 %v721, %v1219
        %v1255 = vmul.f32 %v723, %v1221
        %v1256 = vmul.f32 %v725, %v1223
        %v1257 = vmul.f32 %v727, %v1225
        %v1258 = vmul.f32 %v1226, %v956
        %v1259 = vmul.f32 %v1227, %v958
        %v1260 = vmul.f32 %v1228, %v960
        %v1261 = vmul.f32 %v1229, %v962
        %v1262 = vmul.f32 %v1230, %v966
        %v1263 = vmul.f32 %v1231, %v968
        %v1264 = vmul.f32 %v1232, %v970
        %v1265 = vmul.f32 %v1233, %v972
        %v1266 = vmul.f32 %v1234, %v976
        %v1267 = vmul.f32 %v1235, %v978
        %v1268 = vmul.f32 %v1236, %v980
        %v1269 = vmul.f32 %v1237, %v982
        %v1270 = vmul.f32 %v1238, %v986
        %v1271 = vmul.f32 %v1239, %v988
        %v1272 = vmul.f32 %v1240, %v990
        %v1273 = vmul.f32 %v1241, %v992
        %v1274 = vmul.f32 %v1242, %v996
        %v1275 = vmul.f32 %v1243, %v998
        %v1276 = vmul.f32 %v1244, %v1000
        %v1277 = vmul.f32 %v1245, %v1002
        %v1278 = vmul.f32 %v1246, %v1006
        %v1279 = vmul.f32 %v1247, %v1008
        %v1280 = vmul.f32 %v1248, %v1010
        %v1281 = vmul.f32 %v1249, %v1012
        %v1282 = vmul.f32 %v1250, %v1016
        %v1283 = vmul.f32 %v1251, %v1018
        %v1284 = vmul.f32 %v1252, %v1020
        %v1285 = vmul.f32 %v1253, %v1022
        %v1286 = vmul.f32 %v1254, %v1026
        %v1287 = vmul.f32 %v1255, %v1028
        %v1288 = vmul.f32 %v1256, %v1030
        %v1289 = vmul.f32 %v1257, %v1032
        %v1290 = vpack.c.bf16 %v1260, %v1258
        %v1291 = vpack.c.bf16 %v1261, %v1259
        %v1292 = vpack.c.bf16 %v1264, %v1262
        %v1293 = vpack.c.bf16 %v1265, %v1263
        %v1294 = vpack.c.bf16 %v1268, %v1266
        %v1295 = vpack.c.bf16 %v1269, %v1267
        %v1296 = vpack.c.bf16 %v1272, %v1270
        %v1297 = vpack.c.bf16 %v1273, %v1271
        %v1298 = vpack.c.bf16 %v1276, %v1274
        %v1299 = vpack.c.bf16 %v1277, %v1275
        %v1300 = vpack.c.bf16 %v1280, %v1278
        %v1301 = vpack.c.bf16 %v1281, %v1279
        %v1302 = vpack.c.bf16 %v1284, %v1282
        %v1303 = vpack.c.bf16 %v1285, %v1283
        %v1304 = vpack.c.bf16 %v1288, %v1286
        %v1305 = vpack.c.bf16 %v1289, %v1287
        %v1306 = vld [vmem:[%s293] sm:$0xff]
        %v1307 = vld [vmem:[%s293 + $0x8] sm:$0xff]
        %v1308 = vld [vmem:[%s293 + $0x10] sm:$0xff]
        %v1309 = vld [vmem:[%s293 + $0x18] sm:$0xff]
        %v1310 = vld [vmem:[%s293 + $0x20] sm:$0xff]
        %v1311 = vld [vmem:[%s293 + $0x28] sm:$0xff]
        %v1312 = vld [vmem:[%s293 + $0x30] sm:$0xff]
        %v1313 = vld [vmem:[%s293 + $0x38] sm:$0xff]
        %v1314 = vld [vmem:[%s293 + $0x40] sm:$0xff]
        %v1315 = vld [vmem:[%s293 + $0x48] sm:$0xff]
        %v1316 = vld [vmem:[%s293 + $0x50] sm:$0xff]
        %v1317 = vld [vmem:[%s293 + $0x58] sm:$0xff]
        %v1318 = vld [vmem:[%s293 + $0x60] sm:$0xff]
        %v1319 = vld [vmem:[%s293 + $0x68] sm:$0xff]
        %v1320 = vld [vmem:[%s293 + $0x70] sm:$0xff]
        %v1321 = vld [vmem:[%s293 + $0x78] sm:$0xff]
        %v1322 = vld [vmem:[%s293 + $0x80] sm:$0xff]
        %v1323 = vld [vmem:[%s293 + $0x88] sm:$0xff]
        %v1324 = vld [vmem:[%s293 + $0x90] sm:$0xff]
        %v1325 = vld [vmem:[%s293 + $0x98] sm:$0xff]
        %v1326 = vld [vmem:[%s293 + $0xa0] sm:$0xff]
        %v1327 = vld [vmem:[%s293 + $0xa8] sm:$0xff]
        %v1328 = vld [vmem:[%s293 + $0xb0] sm:$0xff]
        %v1329 = vld [vmem:[%s293 + $0xb8] sm:$0xff]
        %v1330 = vld [vmem:[%s293 + $0xc0] sm:$0xff]
        %v1331 = vld [vmem:[%s293 + $0xc8] sm:$0xff]
        %v1332 = vld [vmem:[%s293 + $0xd0] sm:$0xff]
        %v1333 = vld [vmem:[%s293 + $0xd8] sm:$0xff]
        %v1334 = vld [vmem:[%s293 + $0xe0] sm:$0xff]
        %v1335 = vld [vmem:[%s293 + $0xe8] sm:$0xff]
        %v1336 = vld [vmem:[%s293 + $0xf0] sm:$0xff]
        %v1337 = vld [vmem:[%s293 + $0xf8] sm:$0xff]
        %v1370 = vunpack.c.l.b16 %v1306
        %v1371 = vunpack.c.h.b16 %v1306
        %v1372 = vunpack.c.l.b16 %v1307
        %v1373 = vunpack.c.h.b16 %v1307
        %v1374 = vunpack.c.l.b16 %v1308
        %v1375 = vunpack.c.h.b16 %v1308
        %v1376 = vunpack.c.l.b16 %v1309
        %v1377 = vunpack.c.h.b16 %v1309
        %v1378 = vunpack.c.l.b16 %v1310
        %v1379 = vunpack.c.h.b16 %v1310
        %v1380 = vunpack.c.l.b16 %v1311
        %v1381 = vunpack.c.h.b16 %v1311
        %v1382 = vunpack.c.l.b16 %v1312
        %v1383 = vunpack.c.h.b16 %v1312
        %v1384 = vunpack.c.l.b16 %v1313
        %v1385 = vunpack.c.h.b16 %v1313
        %v1386 = vunpack.c.l.b16 %v1314
        %v1387 = vunpack.c.h.b16 %v1314
        %v1388 = vunpack.c.l.b16 %v1315
        %v1389 = vunpack.c.h.b16 %v1315
        %v1390 = vunpack.c.l.b16 %v1316
        %v1391 = vunpack.c.h.b16 %v1316
        %v1392 = vunpack.c.l.b16 %v1317
        %v1393 = vunpack.c.h.b16 %v1317
        %v1394 = vunpack.c.l.b16 %v1318
        %v1395 = vunpack.c.h.b16 %v1318
        %v1396 = vunpack.c.l.b16 %v1319
        %v1397 = vunpack.c.h.b16 %v1319
        %v1398 = vunpack.c.l.b16 %v1320
        %v1399 = vunpack.c.h.b16 %v1320
        %v1400 = vunpack.c.l.b16 %v1321
        %v1401 = vunpack.c.h.b16 %v1321
        %v1402 = vunpack.c.l.b16 %v1322
        %v1403 = vunpack.c.h.b16 %v1322
        %v1404 = vunpack.c.l.b16 %v1323
        %v1405 = vunpack.c.h.b16 %v1323
        %v1406 = vunpack.c.l.b16 %v1324
        %v1407 = vunpack.c.h.b16 %v1324
        %v1408 = vunpack.c.l.b16 %v1325
        %v1409 = vunpack.c.h.b16 %v1325
        %v1410 = vunpack.c.l.b16 %v1326
        %v1411 = vunpack.c.h.b16 %v1326
        %v1412 = vunpack.c.l.b16 %v1327
        %v1413 = vunpack.c.h.b16 %v1327
        %v1414 = vunpack.c.l.b16 %v1328
        %v1415 = vunpack.c.h.b16 %v1328
        %v1416 = vunpack.c.l.b16 %v1329
        %v1417 = vunpack.c.h.b16 %v1329
        %v1418 = vunpack.c.l.b16 %v1330
        %v1419 = vunpack.c.h.b16 %v1330
        %v1420 = vunpack.c.l.b16 %v1331
        %v1421 = vunpack.c.h.b16 %v1331
        %v1422 = vunpack.c.l.b16 %v1332
        %v1423 = vunpack.c.h.b16 %v1332
        %v1424 = vunpack.c.l.b16 %v1333
        %v1425 = vunpack.c.h.b16 %v1333
        %v1426 = vunpack.c.l.b16 %v1334
        %v1427 = vunpack.c.h.b16 %v1334
        %v1428 = vunpack.c.l.b16 %v1335
        %v1429 = vunpack.c.h.b16 %v1335
        %v1430 = vunpack.c.l.b16 %v1336
        %v1431 = vunpack.c.h.b16 %v1336
        %v1432 = vunpack.c.l.b16 %v1337
        %v1433 = vunpack.c.h.b16 %v1337
        %v1434 = vpack.c.b16 %v1372, %v1370
        %v1435 = vpack.c.b16 %v1373, %v1371
        %v1436 = vpack.c.b16 %v1376, %v1374
        %v1437 = vpack.c.b16 %v1377, %v1375
        %v1438 = vpack.c.b16 %v1380, %v1378
        %v1439 = vpack.c.b16 %v1381, %v1379
        %v1440 = vpack.c.b16 %v1384, %v1382
        %v1441 = vpack.c.b16 %v1385, %v1383
        %v1442 = vpack.c.b16 %v1388, %v1386
        %v1443 = vpack.c.b16 %v1389, %v1387
        %v1444 = vpack.c.b16 %v1392, %v1390
        %v1445 = vpack.c.b16 %v1393, %v1391
        %v1446 = vpack.c.b16 %v1396, %v1394
        %v1447 = vpack.c.b16 %v1397, %v1395
        %v1448 = vpack.c.b16 %v1400, %v1398
        %v1449 = vpack.c.b16 %v1401, %v1399
        %v1450 = vpack.c.b16 %v1404, %v1402
        %v1451 = vpack.c.b16 %v1405, %v1403
        %v1452 = vpack.c.b16 %v1408, %v1406
        %v1453 = vpack.c.b16 %v1409, %v1407
        %v1454 = vpack.c.b16 %v1412, %v1410
        %v1455 = vpack.c.b16 %v1413, %v1411
        %v1456 = vpack.c.b16 %v1416, %v1414
        %v1457 = vpack.c.b16 %v1417, %v1415
        %v1458 = vpack.c.b16 %v1420, %v1418
        %v1459 = vpack.c.b16 %v1421, %v1419
        %v1460 = vpack.c.b16 %v1424, %v1422
        %v1461 = vpack.c.b16 %v1425, %v1423
        %v1462 = vpack.c.b16 %v1428, %v1426
        %v1463 = vpack.c.b16 %v1429, %v1427
        %v1464 = vpack.c.b16 %v1432, %v1430
        %v1465 = vpack.c.b16 %v1433, %v1431
        %1498 = vmatprep.subr.bf16.mxu0 %v1449
        %1499 = vmatpush1.bf16.msra.mxu0 %v1448
        %1500 = vmatprep.subr.bf16.mxu0 %v1447
        %1501 = vmatpush1.bf16.msra.mxu0 %v1446
        %1502 = vmatprep.subr.bf16.mxu0 %v1445
        %1503 = vmatpush1.bf16.msra.mxu0 %v1444
        %1504 = vmatprep.subr.bf16.mxu0 %v1443
        %1505 = vmatpush1.bf16.msra.mxu0 %v1442
        %1506 = vmatprep.subr.bf16.mxu0 %v1441
        %1507 = vmatpush1.bf16.msra.mxu0 %v1440
        %1508 = vmatprep.subr.bf16.mxu0 %v1439
        %1509 = vmatpush1.bf16.msra.mxu0 %v1438
        %1510 = vmatprep.subr.bf16.mxu0 %v1437
        %1511 = vmatpush1.bf16.msra.mxu0 %v1436
        %1512 = vmatprep.subr.bf16.mxu0 %v1435
        %1513 = vmatpush1.bf16.msra.mxu0 %v1434
        %1514 = vmatprep.subr.bf16.mxu0 %v1465
        %1515 = vmatpush2.bf16.msra.mxu0 %v1464
        %1516 = vmatprep.subr.bf16.mxu0 %v1463
        %1517 = vmatpush2.bf16.msra.mxu0 %v1462
        %1518 = vmatprep.subr.bf16.mxu0 %v1461
        %1519 = vmatpush2.bf16.msra.mxu0 %v1460
        %1520 = vmatprep.subr.bf16.mxu0 %v1459
        %1521 = vmatpush2.bf16.msra.mxu0 %v1458
        %1522 = vmatprep.subr.bf16.mxu0 %v1457
        %1523 = vmatpush2.bf16.msra.mxu0 %v1456
        %1524 = vmatprep.subr.bf16.mxu0 %v1455
        %1525 = vmatpush2.bf16.msra.mxu0 %v1454
        %1526 = vmatprep.subr.bf16.mxu0 %v1453
        %1527 = vmatpush2.bf16.msra.mxu0 %v1452
        %1528 = vmatprep.subr.bf16.mxu0 %v1451
        %1529 = vmatpush2.bf16.msra.mxu0 %v1450
        %1530 = vmatprep.mubr.bf16.mxu0 %v1291
        %1531 = vmatmul.mubr.bf16.gmra.mxu0 %v1290
        %v1532 = vpop.f32.mrf.mxu0
        %v1533 = vadd.f32 0.0, %v1532
        %v1534 = vpop.f32.mrf.mxu0
        %v1535 = vadd.f32 0.0, %v1534
        %v1536 = vpop.f32.mrf.mxu0
        %v1537 = vadd.f32 0.0, %v1536
        %v1538 = vpop.f32.mrf.mxu0
        %v1539 = vadd.f32 0.0, %v1538
        %1540 = vmatprep.mubr.bf16.mxu0 %v1293
        %1541 = vmatmul.mubr.bf16.gmra.mxu0 %v1292
        %v1542 = vpop.f32.mrf.mxu0
        %v1543 = vadd.f32 0.0, %v1542
        %v1544 = vpop.f32.mrf.mxu0
        %v1545 = vadd.f32 0.0, %v1544
        %v1546 = vpop.f32.mrf.mxu0
        %v1547 = vadd.f32 0.0, %v1546
        %v1548 = vpop.f32.mrf.mxu0
        %v1549 = vadd.f32 0.0, %v1548
        %1550 = vmatprep.mubr.bf16.mxu0 %v1295
        %1551 = vmatmul.mubr.bf16.gmra.mxu0 %v1294
        %v1552 = vpop.f32.mrf.mxu0
        %v1553 = vadd.f32 0.0, %v1552
        %v1554 = vpop.f32.mrf.mxu0
        %v1555 = vadd.f32 0.0, %v1554
        %v1556 = vpop.f32.mrf.mxu0
        %v1557 = vadd.f32 0.0, %v1556
        %v1558 = vpop.f32.mrf.mxu0
        %v1559 = vadd.f32 0.0, %v1558
        %1560 = vmatprep.mubr.bf16.mxu0 %v1297
        %1561 = vmatmul.mubr.bf16.gmra.mxu0 %v1296
        %v1562 = vpop.f32.mrf.mxu0
        %v1563 = vadd.f32 0.0, %v1562
        %v1564 = vpop.f32.mrf.mxu0
        %v1565 = vadd.f32 0.0, %v1564
        %v1566 = vpop.f32.mrf.mxu0
        %v1567 = vadd.f32 0.0, %v1566
        %v1568 = vpop.f32.mrf.mxu0
        %v1569 = vadd.f32 0.0, %v1568
        %1570 = vmatprep.mubr.bf16.mxu0 %v1299
        %1571 = vmatmul.mubr.bf16.gmra.mxu0 %v1298
        %v1572 = vpop.f32.mrf.mxu0
        %v1573 = vadd.f32 0.0, %v1572
        %v1574 = vpop.f32.mrf.mxu0
        %v1575 = vadd.f32 0.0, %v1574
        %v1576 = vpop.f32.mrf.mxu0
        %v1577 = vadd.f32 0.0, %v1576
        %v1578 = vpop.f32.mrf.mxu0
        %v1579 = vadd.f32 0.0, %v1578
        %1580 = vmatprep.mubr.bf16.mxu0 %v1301
        %1581 = vmatmul.mubr.bf16.gmra.mxu0 %v1300
        %v1582 = vpop.f32.mrf.mxu0
        %v1583 = vadd.f32 0.0, %v1582
        %v1584 = vpop.f32.mrf.mxu0
        %v1585 = vadd.f32 0.0, %v1584
        %v1586 = vpop.f32.mrf.mxu0
        %v1587 = vadd.f32 0.0, %v1586
        %v1588 = vpop.f32.mrf.mxu0
        %v1589 = vadd.f32 0.0, %v1588
        %1590 = vmatprep.mubr.bf16.mxu0 %v1303
        %1591 = vmatmul.mubr.bf16.gmra.mxu0 %v1302
        %v1592 = vpop.f32.mrf.mxu0
        %v1593 = vadd.f32 0.0, %v1592
        %v1594 = vpop.f32.mrf.mxu0
        %v1595 = vadd.f32 0.0, %v1594
        %v1596 = vpop.f32.mrf.mxu0
        %v1597 = vadd.f32 0.0, %v1596
        %v1598 = vpop.f32.mrf.mxu0
        %v1599 = vadd.f32 0.0, %v1598
        %1600 = vmatprep.mubr.bf16.mxu0 %v1305
        %1601 = vmatmul.mubr.bf16.gmra.mxu0 %v1304
        %v1602 = vpop.f32.mrf.mxu0
        %v1603 = vadd.f32 0.0, %v1602
        %v1604 = vpop.f32.mrf.mxu0
        %v1605 = vadd.f32 0.0, %v1604
        %v1606 = vpop.f32.mrf.mxu0
        %v1607 = vadd.f32 0.0, %v1606
        %v1608 = vpop.f32.mrf.mxu0
        %v1609 = vadd.f32 0.0, %v1608
        %1610 = vdwg.mxu0
        %p1611 = scmp.eq.s32.totalorder %s28, 0
        // Predicated region
        $region53: #{tpu_custom_call.1} parent=35 // pred_check
          %p1612 = pneg %p1611
        $region54: #{tpu_custom_call.1} parent=35 // pred_check_branch
          %1614 = sbr.rel (%p1612) target = $region56
        $region55: #{tpu_custom_call.1} parent=35 // pred_region
          %1615 = vst [vmem:[#allocation2] sm:$0xff] %v1533
          %1616 = vst [vmem:[#allocation2 + $0x8] sm:$0xff] %v1535
          %1617 = vst [vmem:[#allocation2 + $0x10] sm:$0xff] %v1537
          %1618 = vst [vmem:[#allocation2 + $0x18] sm:$0xff] %v1539
          %1619 = vst [vmem:[#allocation2 + $0x20] sm:$0xff] %v1543
          %1620 = vst [vmem:[#allocation2 + $0x28] sm:$0xff] %v1545
          %1621 = vst [vmem:[#allocation2 + $0x30] sm:$0xff] %v1547
          %1622 = vst [vmem:[#allocation2 + $0x38] sm:$0xff] %v1549
          %1623 = vst [vmem:[#allocation2 + $0x40] sm:$0xff] %v1553
          %1624 = vst [vmem:[#allocation2 + $0x48] sm:$0xff] %v1555
          %1625 = vst [vmem:[#allocation2 + $0x50] sm:$0xff] %v1557
          %1626 = vst [vmem:[#allocation2 + $0x58] sm:$0xff] %v1559
          %1627 = vst [vmem:[#allocation2 + $0x60] sm:$0xff] %v1563
          %1628 = vst [vmem:[#allocation2 + $0x68] sm:$0xff] %v1565
          %1629 = vst [vmem:[#allocation2 + $0x70] sm:$0xff] %v1567
          %1630 = vst [vmem:[#allocation2 + $0x78] sm:$0xff] %v1569
          %1631 = vst [vmem:[#allocation2 + $0x80] sm:$0xff] %v1573
          %1632 = vst [vmem:[#allocation2 + $0x88] sm:$0xff] %v1575
          %1633 = vst [vmem:[#allocation2 + $0x90] sm:$0xff] %v1577
          %1634 = vst [vmem:[#allocation2 + $0x98] sm:$0xff] %v1579
          %1635 = vst [vmem:[#allocation2 + $0xa0] sm:$0xff] %v1583
          %1636 = vst [vmem:[#allocation2 + $0xa8] sm:$0xff] %v1585
          %1637 = vst [vmem:[#allocation2 + $0xb0] sm:$0xff] %v1587
          %1638 = vst [vmem:[#allocation2 + $0xb8] sm:$0xff] %v1589
          %1639 = vst [vmem:[#allocation2 + $0xc0] sm:$0xff] %v1593
          %1640 = vst [vmem:[#allocation2 + $0xc8] sm:$0xff] %v1595
          %1641 = vst [vmem:[#allocation2 + $0xd0] sm:$0xff] %v1597
          %1642 = vst [vmem:[#allocation2 + $0xd8] sm:$0xff] %v1599
          %1643 = vst [vmem:[#allocation2 + $0xe0] sm:$0xff] %v1603
          %1644 = vst [vmem:[#allocation2 + $0xe8] sm:$0xff] %v1605
          %1645 = vst [vmem:[#allocation2 + $0xf0] sm:$0xff] %v1607
          %1646 = vst [vmem:[#allocation2 + $0xf8] sm:$0xff] %v1609
        $region56: #{tpu_custom_call.1} parent=35 // pred_fallthru
          _
        %p1647 = scmp.gt.s32.totalorder %s28, 0
        %p1648 = scmp.lt.s32.totalorder %s28, 1
        %p1649 = pnand %p1647, %p1648
        %p1650 = pneg %p1649
        // Predicated region
        $region57: #{tpu_custom_call.1} parent=35 // pred_check
          _
        $region58: #{tpu_custom_call.1} parent=35 // pred_check_branch
          %1652 = sbr.rel (%p1649) target = $region60
        $region59: #{tpu_custom_call.1} parent=35 // pred_region
          %v1653 = vld [vmem:[#allocation2] sm:$0xff]
          %v1654 = vld [vmem:[#allocation2 + $0x8] sm:$0xff]
          %v1655 = vld [vmem:[#allocation2 + $0x10] sm:$0xff]
          %v1656 = vld [vmem:[#allocation2 + $0x18] sm:$0xff]
          %v1657 = vld [vmem:[#allocation2 + $0x20] sm:$0xff]
          %v1658 = vld [vmem:[#allocation2 + $0x28] sm:$0xff]
          %v1659 = vld [vmem:[#allocation2 + $0x30] sm:$0xff]
          %v1660 = vld [vmem:[#allocation2 + $0x38] sm:$0xff]
          %v1661 = vld [vmem:[#allocation2 + $0x40] sm:$0xff]
          %v1662 = vld [vmem:[#allocation2 + $0x48] sm:$0xff]
          %v1663 = vld [vmem:[#allocation2 + $0x50] sm:$0xff]
          %v1664 = vld [vmem:[#allocation2 + $0x58] sm:$0xff]
          %v1665 = vld [vmem:[#allocation2 + $0x60] sm:$0xff]
          %v1666 = vld [vmem:[#allocation2 + $0x68] sm:$0xff]
          %v1667 = vld [vmem:[#allocation2 + $0x70] sm:$0xff]
          %v1668 = vld [vmem:[#allocation2 + $0x78] sm:$0xff]
          %v1669 = vld [vmem:[#allocation2 + $0x80] sm:$0xff]
          %v1670 = vld [vmem:[#allocation2 + $0x88] sm:$0xff]
          %v1671 = vld [vmem:[#allocation2 + $0x90] sm:$0xff]
          %v1672 = vld [vmem:[#allocation2 + $0x98] sm:$0xff]
          %v1673 = vld [vmem:[#allocation2 + $0xa0] sm:$0xff]
          %v1674 = vld [vmem:[#allocation2 + $0xa8] sm:$0xff]
          %v1675 = vld [vmem:[#allocation2 + $0xb0] sm:$0xff]
          %v1676 = vld [vmem:[#allocation2 + $0xb8] sm:$0xff]
          %v1677 = vld [vmem:[#allocation2 + $0xc0] sm:$0xff]
          %v1678 = vld [vmem:[#allocation2 + $0xc8] sm:$0xff]
          %v1679 = vld [vmem:[#allocation2 + $0xd0] sm:$0xff]
          %v1680 = vld [vmem:[#allocation2 + $0xd8] sm:$0xff]
          %v1681 = vld [vmem:[#allocation2 + $0xe0] sm:$0xff]
          %v1682 = vld [vmem:[#allocation2 + $0xe8] sm:$0xff]
          %v1683 = vld [vmem:[#allocation2 + $0xf0] sm:$0xff]
          %v1684 = vld [vmem:[#allocation2 + $0xf8] sm:$0xff]
          %v1685 = vadd.f32 %v1653, %v1533
          %v1686 = vadd.f32 %v1654, %v1535
          %v1687 = vadd.f32 %v1655, %v1537
          %v1688 = vadd.f32 %v1656, %v1539
          %v1689 = vadd.f32 %v1657, %v1543
          %v1690 = vadd.f32 %v1658, %v1545
          %v1691 = vadd.f32 %v1659, %v1547
          %v1692 = vadd.f32 %v1660, %v1549
          %v1693 = vadd.f32 %v1661, %v1553
          %v1694 = vadd.f32 %v1662, %v1555
          %v1695 = vadd.f32 %v1663, %v1557
          %v1696 = vadd.f32 %v1664, %v1559
          %v1697 = vadd.f32 %v1665, %v1563
          %v1698 = vadd.f32 %v1666, %v1565
          %v1699 = vadd.f32 %v1667, %v1567
          %v1700 = vadd.f32 %v1668, %v1569
          %v1701 = vadd.f32 %v1669, %v1573
          %v1702 = vadd.f32 %v1670, %v1575
          %v1703 = vadd.f32 %v1671, %v1577
          %v1704 = vadd.f32 %v1672, %v1579
          %v1705 = vadd.f32 %v1673, %v1583
          %v1706 = vadd.f32 %v1674, %v1585
          %v1707 = vadd.f32 %v1675, %v1587
          %v1708 = vadd.f32 %v1676, %v1589
          %v1709 = vadd.f32 %v1677, %v1593
          %v1710 = vadd.f32 %v1678, %v1595
          %v1711 = vadd.f32 %v1679, %v1597
          %v1712 = vadd.f32 %v1680, %v1599
          %v1713 = vadd.f32 %v1681, %v1603
          %v1714 = vadd.f32 %v1682, %v1605
          %v1715 = vadd.f32 %v1683, %v1607
          %v1716 = vadd.f32 %v1684, %v1609
          %1717 = vst [vmem:[#allocation2] sm:$0xff] %v1685
          %1718 = vst [vmem:[#allocation2 + $0x8] sm:$0xff] %v1686
          %1719 = vst [vmem:[#allocation2 + $0x10] sm:$0xff] %v1687
          %1720 = vst [vmem:[#allocation2 + $0x18] sm:$0xff] %v1688
          %1721 = vst [vmem:[#allocation2 + $0x20] sm:$0xff] %v1689
          %1722 = vst [vmem:[#allocation2 + $0x28] sm:$0xff] %v1690
          %1723 = vst [vmem:[#allocation2 + $0x30] sm:$0xff] %v1691
          %1724 = vst [vmem:[#allocation2 + $0x38] sm:$0xff] %v1692
          %1725 = vst [vmem:[#allocation2 + $0x40] sm:$0xff] %v1693
          %1726 = vst [vmem:[#allocation2 + $0x48] sm:$0xff] %v1694
          %1727 = vst [vmem:[#allocation2 + $0x50] sm:$0xff] %v1695
          %1728 = vst [vmem:[#allocation2 + $0x58] sm:$0xff] %v1696
          %1729 = vst [vmem:[#allocation2 + $0x60] sm:$0xff] %v1697
          %1730 = vst [vmem:[#allocation2 + $0x68] sm:$0xff] %v1698
          %1731 = vst [vmem:[#allocation2 + $0x70] sm:$0xff] %v1699
          %1732 = vst [vmem:[#allocation2 + $0x78] sm:$0xff] %v1700
          %1733 = vst [vmem:[#allocation2 + $0x80] sm:$0xff] %v1701
          %1734 = vst [vmem:[#allocation2 + $0x88] sm:$0xff] %v1702
          %1735 = vst [vmem:[#allocation2 + $0x90] sm:$0xff] %v1703
          %1736 = vst [vmem:[#allocation2 + $0x98] sm:$0xff] %v1704
          %1737 = vst [vmem:[#allocation2 + $0xa0] sm:$0xff] %v1705
          %1738 = vst [vmem:[#allocation2 + $0xa8] sm:$0xff] %v1706
          %1739 = vst [vmem:[#allocation2 + $0xb0] sm:$0xff] %v1707
          %1740 = vst [vmem:[#allocation2 + $0xb8] sm:$0xff] %v1708
          %1741 = vst [vmem:[#allocation2 + $0xc0] sm:$0xff] %v1709
          %1742 = vst [vmem:[#allocation2 + $0xc8] sm:$0xff] %v1710
          %1743 = vst [vmem:[#allocation2 + $0xd0] sm:$0xff] %v1711
          %1744 = vst [vmem:[#allocation2 + $0xd8] sm:$0xff] %v1712
          %1745 = vst [vmem:[#allocation2 + $0xe0] sm:$0xff] %v1713
          %1746 = vst [vmem:[#allocation2 + $0xe8] sm:$0xff] %v1714
          %1747 = vst [vmem:[#allocation2 + $0xf0] sm:$0xff] %v1715
          %1748 = vst [vmem:[#allocation2 + $0xf8] sm:$0xff] %v1716
        $region60: #{tpu_custom_call.1} parent=35 // pred_fallthru
          _
        %p1749 = scmp.eq.s32.totalorder %s28, 1
        // Predicated region
        $region61: #{tpu_custom_call.1} parent=35 // pred_check
          %p1750 = pneg %p1749
        $region62: #{tpu_custom_call.1} parent=35 // pred_check_branch
          %1752 = sbr.rel (%p1750) target = $region64
        $region63: #{tpu_custom_call.1} parent=35 // pred_region
          %v1753 = vld [vmem:[#allocation2] sm:$0xff]
          %v1754 = vld [vmem:[#allocation2 + $0x8] sm:$0xff]
          %v1755 = vld [vmem:[#allocation2 + $0x10] sm:$0xff]
          %v1756 = vld [vmem:[#allocation2 + $0x18] sm:$0xff]
          %v1757 = vld [vmem:[#allocation2 + $0x20] sm:$0xff]
          %v1758 = vld [vmem:[#allocation2 + $0x28] sm:$0xff]
          %v1759 = vld [vmem:[#allocation2 + $0x30] sm:$0xff]
          %v1760 = vld [vmem:[#allocation2 + $0x38] sm:$0xff]
          %v1761 = vld [vmem:[#allocation2 + $0x40] sm:$0xff]
          %v1762 = vld [vmem:[#allocation2 + $0x48] sm:$0xff]
          %v1763 = vld [vmem:[#allocation2 + $0x50] sm:$0xff]
          %v1764 = vld [vmem:[#allocation2 + $0x58] sm:$0xff]
          %v1765 = vld [vmem:[#allocation2 + $0x60] sm:$0xff]
          %v1766 = vld [vmem:[#allocation2 + $0x68] sm:$0xff]
          %v1767 = vld [vmem:[#allocation2 + $0x70] sm:$0xff]
          %v1768 = vld [vmem:[#allocation2 + $0x78] sm:$0xff]
          %v1769 = vld [vmem:[#allocation2 + $0x80] sm:$0xff]
          %v1770 = vld [vmem:[#allocation2 + $0x88] sm:$0xff]
          %v1771 = vld [vmem:[#allocation2 + $0x90] sm:$0xff]
          %v1772 = vld [vmem:[#allocation2 + $0x98] sm:$0xff]
          %v1773 = vld [vmem:[#allocation2 + $0xa0] sm:$0xff]
          %v1774 = vld [vmem:[#allocation2 + $0xa8] sm:$0xff]
          %v1775 = vld [vmem:[#allocation2 + $0xb0] sm:$0xff]
          %v1776 = vld [vmem:[#allocation2 + $0xb8] sm:$0xff]
          %v1777 = vld [vmem:[#allocation2 + $0xc0] sm:$0xff]
          %v1778 = vld [vmem:[#allocation2 + $0xc8] sm:$0xff]
          %v1779 = vld [vmem:[#allocation2 + $0xd0] sm:$0xff]
          %v1780 = vld [vmem:[#allocation2 + $0xd8] sm:$0xff]
          %v1781 = vld [vmem:[#allocation2 + $0xe0] sm:$0xff]
          %v1782 = vld [vmem:[#allocation2 + $0xe8] sm:$0xff]
          %v1783 = vld [vmem:[#allocation2 + $0xf0] sm:$0xff]
          %v1784 = vld [vmem:[#allocation2 + $0xf8] sm:$0xff]
          %v1785 = vadd.f32 %v1753, %v1533
          %v1786 = vadd.f32 %v1754, %v1535
          %v1787 = vadd.f32 %v1755, %v1537
          %v1788 = vadd.f32 %v1756, %v1539
          %v1789 = vadd.f32 %v1757, %v1543
          %v1790 = vadd.f32 %v1758, %v1545
          %v1791 = vadd.f32 %v1759, %v1547
          %v1792 = vadd.f32 %v1760, %v1549
          %v1793 = vadd.f32 %v1761, %v1553
          %v1794 = vadd.f32 %v1762, %v1555
          %v1795 = vadd.f32 %v1763, %v1557
          %v1796 = vadd.f32 %v1764, %v1559
          %v1797 = vadd.f32 %v1765, %v1563
          %v1798 = vadd.f32 %v1766, %v1565
          %v1799 = vadd.f32 %v1767, %v1567
          %v1800 = vadd.f32 %v1768, %v1569
          %v1801 = vadd.f32 %v1769, %v1573
          %v1802 = vadd.f32 %v1770, %v1575
          %v1803 = vadd.f32 %v1771, %v1577
          %v1804 = vadd.f32 %v1772, %v1579
          %v1805 = vadd.f32 %v1773, %v1583
          %v1806 = vadd.f32 %v1774, %v1585
          %v1807 = vadd.f32 %v1775, %v1587
          %v1808 = vadd.f32 %v1776, %v1589
          %v1809 = vadd.f32 %v1777, %v1593
          %v1810 = vadd.f32 %v1778, %v1595
          %v1811 = vadd.f32 %v1779, %v1597
          %v1812 = vadd.f32 %v1780, %v1599
          %v1813 = vadd.f32 %v1781, %v1603
          %v1814 = vadd.f32 %v1782, %v1605
          %v1815 = vadd.f32 %v1783, %v1607
          %v1816 = vadd.f32 %v1784, %v1609
          %v1817 = vpack.c.bf16 %v1787, %v1785
          %v1818 = vpack.c.bf16 %v1788, %v1786
          %v1819 = vpack.c.bf16 %v1791, %v1789
          %v1820 = vpack.c.bf16 %v1792, %v1790
          %v1821 = vpack.c.bf16 %v1795, %v1793
          %v1822 = vpack.c.bf16 %v1796, %v1794
          %v1823 = vpack.c.bf16 %v1799, %v1797
          %v1824 = vpack.c.bf16 %v1800, %v1798
          %v1825 = vpack.c.bf16 %v1803, %v1801
          %v1826 = vpack.c.bf16 %v1804, %v1802
          %v1827 = vpack.c.bf16 %v1807, %v1805
          %v1828 = vpack.c.bf16 %v1808, %v1806
          %v1829 = vpack.c.bf16 %v1811, %v1809
          %v1830 = vpack.c.bf16 %v1812, %v1810
          %v1831 = vpack.c.bf16 %v1815, %v1813
          %v1832 = vpack.c.bf16 %v1816, %v1814
          %v1849 = vunpack.c.l.b16 %v1817
          %v1850 = vunpack.c.l.b16 %v1818
          %v1851 = vunpack.c.h.b16 %v1817
          %v1852 = vunpack.c.h.b16 %v1818
          %v1853 = vunpack.c.l.b16 %v1819
          %v1854 = vunpack.c.l.b16 %v1820
          %v1855 = vunpack.c.h.b16 %v1819
          %v1856 = vunpack.c.h.b16 %v1820
          %v1857 = vunpack.c.l.b16 %v1821
          %v1858 = vunpack.c.l.b16 %v1822
          %v1859 = vunpack.c.h.b16 %v1821
          %v1860 = vunpack.c.h.b16 %v1822
          %v1861 = vunpack.c.l.b16 %v1823
          %v1862 = vunpack.c.l.b16 %v1824
          %v1863 = vunpack.c.h.b16 %v1823
          %v1864 = vunpack.c.h.b16 %v1824
          %v1865 = vunpack.c.l.b16 %v1825
          %v1866 = vunpack.c.l.b16 %v1826
          %v1867 = vunpack.c.h.b16 %v1825
          %v1868 = vunpack.c.h.b16 %v1826
          %v1869 = vunpack.c.l.b16 %v1827
          %v1870 = vunpack.c.l.b16 %v1828
          %v1871 = vunpack.c.h.b16 %v1827
          %v1872 = vunpack.c.h.b16 %v1828
          %v1873 = vunpack.c.l.b16 %v1829
          %v1874 = vunpack.c.l.b16 %v1830
          %v1875 = vunpack.c.h.b16 %v1829
          %v1876 = vunpack.c.h.b16 %v1830
          %v1877 = vunpack.c.l.b16 %v1831
          %v1878 = vunpack.c.l.b16 %v1832
          %v1879 = vunpack.c.h.b16 %v1831
          %v1880 = vunpack.c.h.b16 %v1832
          %v1881 = vpack.c.b16 %v1850, %v1849
          %v1882 = vpack.c.b16 %v1852, %v1851
          %v1883 = vpack.c.b16 %v1854, %v1853
          %v1884 = vpack.c.b16 %v1856, %v1855
          %v1885 = vpack.c.b16 %v1858, %v1857
          %v1886 = vpack.c.b16 %v1860, %v1859
          %v1887 = vpack.c.b16 %v1862, %v1861
          %v1888 = vpack.c.b16 %v1864, %v1863
          %v1889 = vpack.c.b16 %v1866, %v1865
          %v1890 = vpack.c.b16 %v1868, %v1867
          %v1891 = vpack.c.b16 %v1870, %v1869
          %v1892 = vpack.c.b16 %v1872, %v1871
          %v1893 = vpack.c.b16 %v1874, %v1873
          %v1894 = vpack.c.b16 %v1876, %v1875
          %v1895 = vpack.c.b16 %v1878, %v1877
          %v1896 = vpack.c.b16 %v1880, %v1879
          %1913 = vst [vmem:[#allocation11] sm:$0xff] %v1881
          %1914 = vst [vmem:[#allocation11 + $0x8] sm:$0xff] %v1882
          %1915 = vst [vmem:[#allocation11 + $0x10] sm:$0xff] %v1883
          %1916 = vst [vmem:[#allocation11 + $0x18] sm:$0xff] %v1884
          %1917 = vst [vmem:[#allocation11 + $0x20] sm:$0xff] %v1885
          %1918 = vst [vmem:[#allocation11 + $0x28] sm:$0xff] %v1886
          %1919 = vst [vmem:[#allocation11 + $0x30] sm:$0xff] %v1887
          %1920 = vst [vmem:[#allocation11 + $0x38] sm:$0xff] %v1888
          %1921 = vst [vmem:[#allocation11 + $0x40] sm:$0xff] %v1889
          %1922 = vst [vmem:[#allocation11 + $0x48] sm:$0xff] %v1890
          %1923 = vst [vmem:[#allocation11 + $0x50] sm:$0xff] %v1891
          %1924 = vst [vmem:[#allocation11 + $0x58] sm:$0xff] %v1892
          %1925 = vst [vmem:[#allocation11 + $0x60] sm:$0xff] %v1893
          %1926 = vst [vmem:[#allocation11 + $0x68] sm:$0xff] %v1894
          %1927 = vst [vmem:[#allocation11 + $0x70] sm:$0xff] %v1895
          %1928 = vst [vmem:[#allocation11 + $0x78] sm:$0xff] %v1896
        $region64: #{tpu_custom_call.1} parent=35 // pred_fallthru
          _
        // Predicated region
        $region65: #{tpu_custom_call.1} parent=35 // pred_check
          %p1929 = pneg %p157
        $region66: #{tpu_custom_call.1} parent=35 // pred_check_branch
          %1931 = sbr.rel (%p1929) target = $region68
        $region67: #{tpu_custom_call.1} parent=35 // pred_region
          %s1932 = smul.u32 16, %s27
          %s1934 = ssub.s32 2048, 2048
          %1935 = vsyncadd [#allocation5], %s1934
          %s1936 = smul.addr %s1932, 2
          %s1937 = smul.addr %s1936, 64
          %s1938 = scalar_lea.hbm %s4, %s1937
          %s1939 = sshll.u32 [#allocation11], 4
          %s1940 = int_to_ptr.vmem [resolvable:$true] %s1939
          %1945 = dma.vmem_to_hbm [thread:$0]  %s1940, 2048, %s1938, [#allocation5], 128, 128, 8
        $region68: #{tpu_custom_call.1} parent=35 // pred_fallthru
          _
        // Predicated region
        $region69: #{tpu_custom_call.1} parent=35 // pred_check
          %p1946 = pneg %p157
        $region70: #{tpu_custom_call.1} parent=35 // pred_check_branch
          %1948 = sbr.rel (%p1946) target = $region72
        $region71: #{tpu_custom_call.1} parent=35 // pred_region
          %1949 = dma.done [#allocation5], 2048
        $region72: #{tpu_custom_call.1} parent=35 // pred_fallthru
          _
      $region36: #{tpu_custom_call.1} parent=5 // pred_fallthru
        _
      %p1950 = scmp.le.s32.totalorder 2, %s18
      // Predicated region
      $region73: #{tpu_custom_call.1} parent=5 // pred_check
        %p1951 = pneg %p1950
      $region74: #{tpu_custom_call.1} parent=5 // pred_check_branch
        %1953 = sbr.rel (%p1951) target = $region76
      $region75: #{tpu_custom_call.1} parent=5 // pred_region
        %s1954 = ssub.s32 %s18, 2
      $region76: #{tpu_custom_call.1} parent=5 // pred_fallthru
        _
    $region6: #{tpu_custom_call.1} parent=1 // loop_footer
      %s22 = sadd.s32 1, %s18
    $region7: #{tpu_custom_call.1} parent=1 // loop_footer_branch
      %17 = sbr.rel target = $region3
    $region8: #{tpu_custom_call.1} parent=1 // loop_exit
      _
    %1955 = vsyncpa [#allocation4], 1
    %s1956 = scalar_lea.sflag [#allocation4], 1
    %1957 = vsyncpa %s1956, 1
    %1958 = vsyncpa [#allocation7], 1
    %s1959 = scalar_lea.sflag [#allocation7], 1
    %1960 = vsyncpa %s1959, 1
    %1961 = vsyncpa [#allocation10], 1
    %s1962 = scalar_lea.sflag [#allocation10], 1
    %1963 = vsyncpa %s1962, 1
    %1964 = vsyncpa [#allocation5], 1
    %s1965 = scalar_lea.sflag [#allocation5], 1
    %1966 = vsyncpa %s1965, 1

</llo_original>
